<compile_context>
chip_gen: v6e
topology: v6e:2x2x1
jax: 0.10.0
libtpu: 0.0.40
codegen_flags: <defaults>
</compile_context>

<pallas_src>
import jax
import jax.numpy as jnp
from jax import lax
from jax.experimental import pallas as pl
from jax.experimental.pallas import tpu as pltpu

_VMEM_BUDGET_BYTES = 48 * 1024 * 1024   # leave headroom under v7x's 64 MiB physical
_H1, _H2 = 512, 128


def _round_up(a, m):
    return (a + m - 1) // m * m


def _vmem_estimate(tile_b, K):
    """Rough VMEM bytes for one grid step (x dbl-buf, single-buffered weights,
    compiler scratch for h1/h2)."""
    x_buf = 2 * tile_b * K * 4                                    # f32 x tile, double-buffered
    weights = _H1 * K * 2 + _H2 * _H1 * 2 + (_H1 + _H2 + _H2) * 4  # bf16 W1/W2 + f32 b1/b2/w3
    scratch = tile_b * (_H1 * 4 + _H1 * 2 + _H2 * 4)               # h1 f32 + h1 bf16 + h2 f32
    out_buf = 2 * tile_b * 4
    return x_buf + weights + scratch + out_buf


def _choose_tile_b(B, K):
    """Biggest lane tile (multiple of 256 preferred, 128 floor) that fits the
    VMEM budget; keep >=2 tiles when B > 256 so v7x's two TCs both get work."""
    b128 = _round_up(max(B, 1), 128)
    tile_b = 128
    for cand in (1024, 512, 256):
        if cand <= b128 and _vmem_estimate(cand, K) <= _VMEM_BUDGET_BYTES:
            tile_b = cand
            break
    # v7x megacore: a single tile leaves one TensorCore idle.
    while B > 256 and pl.cdiv(B, tile_b) < 2 and tile_b > 256:
        tile_b //= 2
    return min(tile_b, b128)


def _mlp_kernel(x_ref, w1_ref, b1_ref, w2_ref, b2_ref, w3_ref, b3_ref, o_ref):
    # x_ref : (TILE_B, K)  f32   -- natural layout, batch on sublanes
    # w1_ref: (512, K)     bf16  (PyTorch (out,in) layout), b1_ref: (512,1) f32
    # w2_ref: (128, 512)   bf16, b2_ref: (128,1) f32
    # w3_ref: (128, 1)     f32,  b3_ref: (1,) f32 in SMEM
    # o_ref : (1, TILE_B)  f32   -- lane-dense output row (batch on lanes)

    x_bf = x_ref[...].astype(jnp.bfloat16)

    # Linear(input_dim, 512) + ReLU   (Dropout(0.2) identity at inference)
    # h1[o, b] = sum_k W1[o, k] * x[b, k]   -> (512, TILE_B), batch on lanes.
    h1 = lax.dot_general(w1_ref[...], x_bf, (((1,), (1,)), ((), ())),
                         preferred_element_type=jnp.float32)
    # Fused ReLU + bf16 cast: single live h1 tensor feeding the next MXU matmul.
    h1 = jnp.maximum(h1 + b1_ref[...], 0.0).astype(jnp.bfloat16)   # (512, TILE_B)

    # Linear(512, 128) + ReLU         (Dropout(0.1) identity at inference)
    h2 = jnp.dot(w2_ref[...], h1, preferred_element_type=jnp.float32)
    h2 = jnp.maximum(h2 + b2_ref[...], 0.0)                        # (128, TILE_B) f32

    # Linear(128, 1) + Sigmoid: 1-wide matmul wastes the MXU -> VPU mul + XLU
    # sublane reduce instead.
    logit = jnp.sum(h2 * w3_ref[...], axis=0, keepdims=True) + b3_ref[0]  # (1, TILE_B)
    o_ref[...] = jax.nn.sigmoid(logit).astype(o_ref.dtype)


def reply_intent_classifier_forward(x, params):
    """x: (B, input_dim) float32. params in PyTorch nn.Linear layout:
       (w1 (512,K), b1 (512,), w2 (128,512), b2 (128,), w3 (1,128), b3 (1,)).
       Returns (B,) float32 (sigmoid probabilities, matches .squeeze())."""
    w1, b1, w2, b2, w3, b3 = params
    B, K = x.shape
    H1, H2 = w1.shape[0], w2.shape[0]  # 512, 128

    tile_b = _choose_tile_b(B, K)
    b_pad = _round_up(B, tile_b)
    num_tiles = b_pad // tile_b

    # Row-only pad of x when B isn't a tile multiple (no transpose, no cast --
    # the bf16 cast happens in-kernel on the streamed tile). No-op if divisible.
    x_in = x if b_pad == B else jnp.pad(x, ((0, b_pad - B), (0, 0)))

    # Weight-side layout/dtype plumbing (tiny tensors; one-off cost).
    w1_bf = w1.astype(jnp.bfloat16)                 # (512, K)  bf16 MXU, f32 accum
    w2_bf = w2.astype(jnp.bfloat16)                 # (128, 512)
    b1_col = b1.reshape(H1, 1).astype(jnp.float32)
    b2_col = b2.reshape(H2, 1).astype(jnp.float32)
    w3_col = w3.reshape(H2, 1).astype(jnp.float32)
    b3_s = b3.reshape(1).astype(jnp.float32)        # SMEM scalar

    flops = 2 * b_pad * (K * H1 + H1 * H2 + H2)
    bytes_accessed = (b_pad * K * 4 + w1_bf.size * 2 + w2_bf.size * 2
                      + (H1 + H2 + H2 + 1) * 4 + b_pad * 4)

    # Scoped-VMEM limit: cover our estimate (+headroom), never above v7x's
    # 64 MiB physical, never below the 32 MiB default.
    vmem_limit = int(min(max(_vmem_estimate(tile_b, K) + (8 << 20), 32 << 20),
                         56 << 20))

    resident = pl.Buffered(1)  # constant-index weights/biases: single buffer

    out = pl.pallas_call(
        _mlp_kernel,
        out_shape=jax.ShapeDtypeStruct((1, b_pad), jnp.float32),
        grid=(num_tiles,),
        in_specs=[
            pl.BlockSpec((tile_b, K), lambda i: (i, 0)),     # x tile: pipelined over batch
            pl.BlockSpec((H1, K), lambda i: (0, 0), pipeline_mode=resident),
            pl.BlockSpec((H1, 1), lambda i: (0, 0), pipeline_mode=resident),
            pl.BlockSpec((H2, H1), lambda i: (0, 0), pipeline_mode=resident),
            pl.BlockSpec((H2, 1), lambda i: (0, 0), pipeline_mode=resident),
            pl.BlockSpec((H2, 1), lambda i: (0, 0), pipeline_mode=resident),
            pl.BlockSpec(memory_space=pltpu.MemorySpace.SMEM),  # b3 scalar
        ],
        out_specs=pl.BlockSpec((1, tile_b), lambda i: (0, i)),  # lane-dense row slab
        compiler_params=pltpu.CompilerParams(
            dimension_semantics=("parallel",),   # batch tiles shard across v7x's 2 TCs
            vmem_limit_bytes=vmem_limit,
        ),
        cost_estimate=pl.CostEstimate(
            flops=flops, transcendentals=b_pad, bytes_accessed=bytes_accessed),
    )(x_in, w1_bf, b1_col, w2_bf, b2_col, w3_col, b3_s)

    return out[0, :B]  # matches PyTorch .squeeze() on the feature axis


def init_params(key, input_dim):
    """Deterministic init in PyTorch nn.Linear layout: W (out,in), b (out,)."""
    dims = [(input_dim, 512), (512, 128), (128, 1)]
    params = []
    for fan_in, fan_out in dims:
        kw, kb, key = jax.random.split(key, 3)
        bound = 1.0 / jnp.sqrt(jnp.float32(fan_in))
        w = jax.random.uniform(kw, (fan_out, fan_in), jnp.float32, -bound, bound)
        b = jax.random.uniform(kb, (fan_out,), jnp.float32, -bound, bound)
        params += [w, b]
    return tuple(params)


def _reference_forward(x, params):
    """Pure-JAX f32 reference mirroring the PyTorch module (eval mode)."""
    w1, b1, w2, b2, w3, b3 = params
    h1 = jnp.maximum(x @ w1.T + b1, 0.0)
    h2 = jnp.maximum(h1 @ w2.T + b2, 0.0)
    return jax.nn.sigmoid(h2 @ w3.T + b3).squeeze()


if __name__ == "__main__":
    key = jax.random.PRNGKey(0)
    B, input_dim = 8, 32

    kx, kp = jax.random.split(key)
    x = jax.random.normal(kx, (B, input_dim), dtype=jnp.float32)
    params = init_params(kp, input_dim)

    y = reply_intent_classifier_forward(x, params)
    y = jax.block_until_ready(y)

    # sanity: shape, sigmoid range, and agreement with the f32 reference
    assert y.shape == (B,), y.shape
    assert bool(jnp.all((y >= 0.0) & (y <= 1.0)))
    y_ref = _reference_forward(x, params)
    assert bool(jnp.allclose(y, y_ref, atol=5e-2)), float(jnp.max(jnp.abs(y - y_ref)))

    print("KERNEL_OK")
</pallas_src>

<mosaic_0001>
module attributes {stable_mosaic.version = 11 : i64} {
  func.func @_mlp_kernel(%arg0: i32, %arg1: memref<128x32xf32, #tpu.memory_space<vmem>>, %arg2: memref<512x32xbf16, #tpu.memory_space<vmem>>, %arg3: memref<512x1xf32, #tpu.memory_space<vmem>>, %arg4: memref<128x512xbf16, #tpu.memory_space<vmem>>, %arg5: memref<128x1xf32, #tpu.memory_space<vmem>>, %arg6: memref<128x1xf32, #tpu.memory_space<vmem>>, %arg7: memref<1xf32, #tpu.memory_space<smem>>, %arg8: memref<1x128xf32, #tpu.memory_space<vmem>>) attributes {dimension_semantics = [#tpu.dimension_semantics<parallel>], iteration_bounds = array<i64: 1>, scalar_prefetch = 0 : i64, scratch_operands = 0 : i64, tpu.core_type = #tpu.core_type<tc>, window_params = [{transform_indices = @transform_0, window_bounds = array<i64: 128, 32>}, {pipeline_mode = #tpu.pipeline_mode<synchronous>, transform_indices = @transform_1, window_bounds = array<i64: 512, 32>}, {pipeline_mode = #tpu.pipeline_mode<synchronous>, transform_indices = @transform_2, window_bounds = array<i64: 512, 1>}, {pipeline_mode = #tpu.pipeline_mode<synchronous>, transform_indices = @transform_3, window_bounds = array<i64: 128, 512>}, {pipeline_mode = #tpu.pipeline_mode<synchronous>, transform_indices = @transform_4, window_bounds = array<i64: 128, 1>}, {pipeline_mode = #tpu.pipeline_mode<synchronous>, transform_indices = @transform_5, window_bounds = array<i64: 128, 1>}, {transform_indices = @transform_6, window_bounds = array<i64: 1>}, {transform_indices = @transform_7, window_bounds = array<i64: 1, 128>}]} {
    %c0 = arith.constant 0 : index
    %c0_0 = arith.constant 0 : index
    %0 = vector.load %arg1[%c0, %c0_0] : memref<128x32xf32, #tpu.memory_space<vmem>>, vector<128x32xf32>
    %1 = arith.truncf %0 : vector<128x32xf32> to vector<128x32xbf16>
    %c0_1 = arith.constant 0 : index
    %c0_2 = arith.constant 0 : index
    %2 = vector.load %arg2[%c0_1, %c0_2] : memref<512x32xbf16, #tpu.memory_space<vmem>>, vector<512x32xbf16>
    %cst = arith.constant dense<0.000000e+00> : vector<512x128xf32>
    %3 = tpu.matmul %2, %1, %cst {dimension_numbers = #tpu.dot_dimension_numbers<[1], [1], [0], [0], [0, 0, 1, 0], [], []>} : vector<512x32xbf16>, vector<128x32xbf16>, vector<512x128xf32> -> vector<512x128xf32>
    %c0_3 = arith.constant 0 : index
    %c0_4 = arith.constant 0 : index
    %4 = vector.load %arg3[%c0_3, %c0_4] : memref<512x1xf32, #tpu.memory_space<vmem>>, vector<512x1xf32>
    %5 = vector.broadcast %4 : vector<512x1xf32> to vector<512x128xf32>
    %6 = arith.addf %3, %5 : vector<512x128xf32>
    %cst_5 = arith.constant 0.000000e+00 : f32
    %7 = vector.broadcast %cst_5 : f32 to vector<512x128xf32>
    %8 = arith.maximumf %6, %7 : vector<512x128xf32>
    %9 = arith.truncf %8 : vector<512x128xf32> to vector<512x128xbf16>
    %c0_6 = arith.constant 0 : index
    %c0_7 = arith.constant 0 : index
    %10 = vector.load %arg4[%c0_6, %c0_7] : memref<128x512xbf16, #tpu.memory_space<vmem>>, vector<128x512xbf16>
    %cst_8 = arith.constant dense<0.000000e+00> : vector<128x128xf32>
    %11 = tpu.matmul %10, %9, %cst_8 {dimension_numbers = #tpu.dot_dimension_numbers<[1], [0], [0], [1], [0, 0, 1, 1], [], []>} : vector<128x512xbf16>, vector<512x128xbf16>, vector<128x128xf32> -> vector<128x128xf32>
    %c0_9 = arith.constant 0 : index
    %c0_10 = arith.constant 0 : index
    %12 = vector.load %arg5[%c0_9, %c0_10] : memref<128x1xf32, #tpu.memory_space<vmem>>, vector<128x1xf32>
    %13 = vector.broadcast %12 : vector<128x1xf32> to vector<128x128xf32>
    %14 = arith.addf %11, %13 : vector<128x128xf32>
    %cst_11 = arith.constant 0.000000e+00 : f32
    %15 = vector.broadcast %cst_11 : f32 to vector<128x128xf32>
    %16 = arith.maximumf %14, %15 : vector<128x128xf32>
    %c0_12 = arith.constant 0 : index
    %c0_13 = arith.constant 0 : index
    %17 = vector.load %arg6[%c0_12, %c0_13] : memref<128x1xf32, #tpu.memory_space<vmem>>, vector<128x1xf32>
    %18 = vector.broadcast %17 : vector<128x1xf32> to vector<128x128xf32>
    %19 = arith.mulf %16, %18 : vector<128x128xf32>
    %cst_14 = arith.constant dense<0.000000e+00> : vector<128xf32>
    %20 = vector.multi_reduction <add>, %19, %cst_14 [0] : vector<128x128xf32> to vector<128xf32>
    %21 = vector.shape_cast %20 : vector<128xf32> to vector<1x128xf32>
    %c0_15 = arith.constant 0 : index
    %22 = memref.load %arg7[%c0_15] : memref<1xf32, #tpu.memory_space<smem>>
    %23 = vector.broadcast %22 : f32 to vector<1x128xf32>
    %24 = arith.addf %21, %23 : vector<1x128xf32>
    %25 = arith.negf %24 : vector<1x128xf32>
    %26 = math.exp %25 : vector<1x128xf32>
    %cst_16 = arith.constant 1.000000e+00 : f32
    %27 = vector.broadcast %cst_16 : f32 to vector<1x128xf32>
    %28 = arith.addf %27, %26 : vector<1x128xf32>
    %29 = arith.divf %27, %28 : vector<1x128xf32>
    %c0_17 = arith.constant 0 : index
    %c0_18 = arith.constant 0 : index
    %30 = vector.load %arg8[%c0_17, %c0_18] : memref<1x128xf32, #tpu.memory_space<vmem>>, vector<1x128xf32>
    tpu.vector_store %arg8[%c0_17, %c0_18], %29 {strides = array<i32>} : memref<1x128xf32, #tpu.memory_space<vmem>>, vector<1x128xf32>,
    return
  }
  func.func @transform_0(%arg0: i32) -> (i32, i32) {
    %c0_i32 = arith.constant 0 : i32
    %c0_i32_0 = arith.constant 0 : i32
    return %arg0, %c0_i32 : i32, i32
  }
  func.func @transform_1(%arg0: i32) -> (i32, i32) {
    %c0_i32 = arith.constant 0 : i32
    %c0_i32_0 = arith.constant 0 : i32
    %c0_i32_1 = arith.constant 0 : i32
    return %c0_i32, %c0_i32_0 : i32, i32
  }
  func.func @transform_2(%arg0: i32) -> (i32, i32) {
    %c0_i32 = arith.constant 0 : i32
    %c0_i32_0 = arith.constant 0 : i32
    %c0_i32_1 = arith.constant 0 : i32
    return %c0_i32, %c0_i32_0 : i32, i32
  }
  func.func @transform_3(%arg0: i32) -> (i32, i32) {
    %c0_i32 = arith.constant 0 : i32
    %c0_i32_0 = arith.constant 0 : i32
    %c0_i32_1 = arith.constant 0 : i32
    return %c0_i32, %c0_i32_0 : i32, i32
  }
  func.func @transform_4(%arg0: i32) -> (i32, i32) {
    %c0_i32 = arith.constant 0 : i32
    %c0_i32_0 = arith.constant 0 : i32
    %c0_i32_1 = arith.constant 0 : i32
    return %c0_i32, %c0_i32_0 : i32, i32
  }
  func.func @transform_5(%arg0: i32) -> (i32, i32) {
    %c0_i32 = arith.constant 0 : i32
    %c0_i32_0 = arith.constant 0 : i32
    %c0_i32_1 = arith.constant 0 : i32
    return %c0_i32, %c0_i32_0 : i32, i32
  }
  func.func @transform_6(%arg0: i32) -> i32 {
    %c0_i32 = arith.constant 0 : i32
    %c0_i32_0 = arith.constant 0 : i32
    return %c0_i32 : i32
  }
  func.func @transform_7(%arg0: i32) -> (i32, i32) {
    %c0_i32 = arith.constant 0 : i32
    %c0_i32_0 = arith.constant 0 : i32
    return %c0_i32, %arg0 : i32, i32
  }
}

</mosaic_0001>

<llo_original>
// kernel: tpu_custom_call.1
$region0: #{tpu_custom_call.1}
  #allocation0 [shape = 'u32[]', space=smem, size = 0x4, offset = 0x4, fixed_abs, tag = 'smem constant byte address 0x4 - core index']
  #allocation1 [shape = 'u32[144,128]{1,0:T(1,128)}', space=vmem, size = 0x12000, scoped, tag = 'internal scratch']
  #allocation2 [shape = 'f32[1]{0:T(128)S(6)}', space=smem, size = 0x200, scoped, tag = 'scoped memory for tpu_custom_call.1']
  %s0 = inlined_call_operand.vmem [shape: f32[128,32], index: 0, kind: input, shape index: {}]
  %s1 = inlined_call_operand.vmem [shape: bf16[512,32], index: 1, kind: input, shape index: {}]
  %s2 = inlined_call_operand.vmem [shape: f32[512,1], index: 2, kind: input, shape index: {}]
  %s3 = inlined_call_operand.vmem [shape: bf16[128,512], index: 3, kind: input, shape index: {}]
  %s4 = inlined_call_operand.vmem [shape: f32[128,1], index: 4, kind: input, shape index: {}]
  %s5 = inlined_call_operand.vmem [shape: f32[128,1], index: 5, kind: input, shape index: {}]
  %s6 = inlined_call_operand.<no memory space> [shape: f32[1], index: 6, kind: input, shape index: {}]
  %s7 = inlined_call_operand.hbm [shape: f32[1,128], index: 7, kind: output, shape index: {}]
  %s8 = sld [smem:[#allocation0]]
  $region38: #{tpu_custom_call.1} parent=0
    _
  %s10 = ssub.s32 1, %s8
  %s11 = scalar_select 0, %s10, %s8
  %12 = sst [smem:[#allocation2]] %s6
  $region1: #{tpu_custom_call.1} parent=0
    #allocation3 [shape = 'u8[512]{0}', space=vmem, size = 0x400, scoped, tag = 'output window, operand 0, single buffered']
    #allocation4 [shape = 's32[1]{0}', space=sflag, size = 0x4, scoped, tag = 'scoped memory for tpu_custom_call.1']
    %13 = vsyncpa [#allocation4], 0
    // Predicated region
    $region2: #{tpu_custom_call.1} parent=1 // pred_check
      _
    $region3: #{tpu_custom_call.1} parent=1 // pred_check_branch
      %15 = sbr.rel (0) target = $region5
    $region4: #{tpu_custom_call.1} parent=1 // pred_region
      _
    $region5: #{tpu_custom_call.1} parent=1 // pred_fallthru
      _
    // Predicated region
    $region6: #{tpu_custom_call.1} parent=1 // pred_check
      _
    $region7: #{tpu_custom_call.1} parent=1 // pred_check_branch
      %17 = sbr.rel (0) target = $region9
    $region8: #{tpu_custom_call.1} parent=1 // pred_region
      _
    $region9: #{tpu_custom_call.1} parent=1 // pred_fallthru
      _
    // Predicated region
    $region10: #{tpu_custom_call.1} parent=1 // pred_check
      _
    $region11: #{tpu_custom_call.1} parent=1 // pred_check_branch
      %19 = sbr.rel (0) target = $region13
    $region12: #{tpu_custom_call.1} parent=1 // pred_region
      _
    $region13: #{tpu_custom_call.1} parent=1 // pred_fallthru
      _
    // Predicated region
    $region14: #{tpu_custom_call.1} parent=1 // pred_check
      _
    $region15: #{tpu_custom_call.1} parent=1 // pred_check_branch
      %21 = sbr.rel (0) target = $region17
    $region16: #{tpu_custom_call.1} parent=1 // pred_region
      _
    $region17: #{tpu_custom_call.1} parent=1 // pred_fallthru
      _
    // Predicated region
    $region18: #{tpu_custom_call.1} parent=1 // pred_check
      _
    $region19: #{tpu_custom_call.1} parent=1 // pred_check_branch
      %23 = sbr.rel (0) target = $region21
    $region20: #{tpu_custom_call.1} parent=1 // pred_region
      _
    $region21: #{tpu_custom_call.1} parent=1 // pred_fallthru
      _
    // Predicated region
    $region22: #{tpu_custom_call.1} parent=1 // pred_check
      _
    $region23: #{tpu_custom_call.1} parent=1 // pred_check_branch
      %25 = sbr.rel (0) target = $region25
    $region24: #{tpu_custom_call.1} parent=1 // pred_region
      _
    $region25: #{tpu_custom_call.1} parent=1 // pred_fallthru
      _
    // Predicated region
    $region26: #{tpu_custom_call.1} parent=1 // pred_check
      _
    $region27: #{tpu_custom_call.1} parent=1 // pred_check_branch
      %27 = sbr.rel (0) target = $region29
    $region28: #{tpu_custom_call.1} parent=1 // pred_region
      _
    $region29: #{tpu_custom_call.1} parent=1 // pred_fallthru
      _
    %v29 = vld [vmem:[%s0] sm:$0xff]
    %v30 = vld [vmem:[%s0 + $0x8] sm:$0xff]
    %v31 = vld [vmem:[%s0 + $0x10] sm:$0xff]
    %v32 = vld [vmem:[%s0 + $0x18] sm:$0xff]
    %v33 = vld [vmem:[%s0 + $0x20] sm:$0xff]
    %v34 = vld [vmem:[%s0 + $0x28] sm:$0xff]
    %v35 = vld [vmem:[%s0 + $0x30] sm:$0xff]
    %v36 = vld [vmem:[%s0 + $0x38] sm:$0xff]
    %v37 = vld [vmem:[%s0 + $0x40] sm:$0xff]
    %v38 = vld [vmem:[%s0 + $0x48] sm:$0xff]
    %v39 = vld [vmem:[%s0 + $0x50] sm:$0xff]
    %v40 = vld [vmem:[%s0 + $0x58] sm:$0xff]
    %v41 = vld [vmem:[%s0 + $0x60] sm:$0xff]
    %v42 = vld [vmem:[%s0 + $0x68] sm:$0xff]
    %v43 = vld [vmem:[%s0 + $0x70] sm:$0xff]
    %v44 = vld [vmem:[%s0 + $0x78] sm:$0xff]
    %v45 = vpack.c.bf16 %v30, %v29
    %v46 = vpack.c.bf16 %v32, %v31
    %v47 = vpack.c.bf16 %v34, %v33
    %v48 = vpack.c.bf16 %v36, %v35
    %v49 = vpack.c.bf16 %v38, %v37
    %v50 = vpack.c.bf16 %v40, %v39
    %v51 = vpack.c.bf16 %v42, %v41
    %v52 = vpack.c.bf16 %v44, %v43
    %v53 = vld [vmem:[%s1] sm:$0xf]
    %v54 = vld [vmem:[%s1 + $0x4] sm:$0xf]
    %v55 = vld [vmem:[%s1 + $0x8] sm:$0xf]
    %v56 = vld [vmem:[%s1 + $0xc] sm:$0xf]
    %v57 = vld [vmem:[%s1 + $0x10] sm:$0xf]
    %v58 = vld [vmem:[%s1 + $0x14] sm:$0xf]
    %v59 = vld [vmem:[%s1 + $0x18] sm:$0xf]
    %v60 = vld [vmem:[%s1 + $0x1c] sm:$0xf]
    %v61 = vld [vmem:[%s1 + $0x20] sm:$0xf]
    %v62 = vld [vmem:[%s1 + $0x24] sm:$0xf]
    %v63 = vld [vmem:[%s1 + $0x28] sm:$0xf]
    %v64 = vld [vmem:[%s1 + $0x2c] sm:$0xf]
    %v65 = vld [vmem:[%s1 + $0x30] sm:$0xf]
    %v66 = vld [vmem:[%s1 + $0x34] sm:$0xf]
    %v67 = vld [vmem:[%s1 + $0x38] sm:$0xf]
    %v68 = vld [vmem:[%s1 + $0x3c] sm:$0xf]
    %v69 = vld [vmem:[%s1 + $0x40] sm:$0xf]
    %v70 = vld [vmem:[%s1 + $0x44] sm:$0xf]
    %v71 = vld [vmem:[%s1 + $0x48] sm:$0xf]
    %v72 = vld [vmem:[%s1 + $0x4c] sm:$0xf]
    %v73 = vld [vmem:[%s1 + $0x50] sm:$0xf]
    %v74 = vld [vmem:[%s1 + $0x54] sm:$0xf]
    %v75 = vld [vmem:[%s1 + $0x58] sm:$0xf]
    %v76 = vld [vmem:[%s1 + $0x5c] sm:$0xf]
    %v77 = vld [vmem:[%s1 + $0x60] sm:$0xf]
    %v78 = vld [vmem:[%s1 + $0x64] sm:$0xf]
    %v79 = vld [vmem:[%s1 + $0x68] sm:$0xf]
    %v80 = vld [vmem:[%s1 + $0x6c] sm:$0xf]
    %v81 = vld [vmem:[%s1 + $0x70] sm:$0xf]
    %v82 = vld [vmem:[%s1 + $0x74] sm:$0xf]
    %v83 = vld [vmem:[%s1 + $0x78] sm:$0xf]
    %v84 = vld [vmem:[%s1 + $0x7c] sm:$0xf]
    %v85 = vld [vmem:[%s1 + $0x80] sm:$0xf]
    %v86 = vld [vmem:[%s1 + $0x84] sm:$0xf]
    %v87 = vld [vmem:[%s1 + $0x88] sm:$0xf]
    %v88 = vld [vmem:[%s1 + $0x8c] sm:$0xf]
    %v89 = vld [vmem:[%s1 + $0x90] sm:$0xf]
    %v90 = vld [vmem:[%s1 + $0x94] sm:$0xf]
    %v91 = vld [vmem:[%s1 + $0x98] sm:$0xf]
    %v92 = vld [vmem:[%s1 + $0x9c] sm:$0xf]
    %v93 = vld [vmem:[%s1 + $0xa0] sm:$0xf]
    %v94 = vld [vmem:[%s1 + $0xa4] sm:$0xf]
    %v95 = vld [vmem:[%s1 + $0xa8] sm:$0xf]
    %v96 = vld [vmem:[%s1 + $0xac] sm:$0xf]
    %v97 = vld [vmem:[%s1 + $0xb0] sm:$0xf]
    %v98 = vld [vmem:[%s1 + $0xb4] sm:$0xf]
    %v99 = vld [vmem:[%s1 + $0xb8] sm:$0xf]
    %v100 = vld [vmem:[%s1 + $0xbc] sm:$0xf]
    %v101 = vld [vmem:[%s1 + $0xc0] sm:$0xf]
    %v102 = vld [vmem:[%s1 + $0xc4] sm:$0xf]
    %v103 = vld [vmem:[%s1 + $0xc8] sm:$0xf]
    %v104 = vld [vmem:[%s1 + $0xcc] sm:$0xf]
    %v105 = vld [vmem:[%s1 + $0xd0] sm:$0xf]
    %v106 = vld [vmem:[%s1 + $0xd4] sm:$0xf]
    %v107 = vld [vmem:[%s1 + $0xd8] sm:$0xf]
    %v108 = vld [vmem:[%s1 + $0xdc] sm:$0xf]
    %v109 = vld [vmem:[%s1 + $0xe0] sm:$0xf]
    %v110 = vld [vmem:[%s1 + $0xe4] sm:$0xf]
    %v111 = vld [vmem:[%s1 + $0xe8] sm:$0xf]
    %v112 = vld [vmem:[%s1 + $0xec] sm:$0xf]
    %v113 = vld [vmem:[%s1 + $0xf0] sm:$0xf]
    %v114 = vld [vmem:[%s1 + $0xf4] sm:$0xf]
    %v115 = vld [vmem:[%s1 + $0xf8] sm:$0xf]
    %v116 = vld [vmem:[%s1 + $0xfc] sm:$0xf]
    %v117 = vld [vmem:[%s2] sm:$0xff]
    %v118 = vld [vmem:[%s2 + $0x8] sm:$0xff]
    %v119 = vld [vmem:[%s2 + $0x10] sm:$0xff]
    %v120 = vld [vmem:[%s2 + $0x18] sm:$0xff]
    %v121 = vld [vmem:[%s2 + $0x20] sm:$0xff]
    %v122 = vld [vmem:[%s2 + $0x28] sm:$0xff]
    %v123 = vld [vmem:[%s2 + $0x30] sm:$0xff]
    %v124 = vld [vmem:[%s2 + $0x38] sm:$0xff]
    %v125 = vld [vmem:[%s2 + $0x40] sm:$0xff]
    %v126 = vld [vmem:[%s2 + $0x48] sm:$0xff]
    %v127 = vld [vmem:[%s2 + $0x50] sm:$0xff]
    %v128 = vld [vmem:[%s2 + $0x58] sm:$0xff]
    %v129 = vld [vmem:[%s2 + $0x60] sm:$0xff]
    %v130 = vld [vmem:[%s2 + $0x68] sm:$0xff]
    %v131 = vld [vmem:[%s2 + $0x70] sm:$0xff]
    %v132 = vld [vmem:[%s2 + $0x78] sm:$0xff]
    %v133 = vld [vmem:[%s2 + $0x80] sm:$0xff]
    %v134 = vld [vmem:[%s2 + $0x88] sm:$0xff]
    %v135 = vld [vmem:[%s2 + $0x90] sm:$0xff]
    %v136 = vld [vmem:[%s2 + $0x98] sm:$0xff]
    %v137 = vld [vmem:[%s2 + $0xa0] sm:$0xff]
    %v138 = vld [vmem:[%s2 + $0xa8] sm:$0xff]
    %v139 = vld [vmem:[%s2 + $0xb0] sm:$0xff]
    %v140 = vld [vmem:[%s2 + $0xb8] sm:$0xff]
    %v141 = vld [vmem:[%s2 + $0xc0] sm:$0xff]
    %v142 = vld [vmem:[%s2 + $0xc8] sm:$0xff]
    %v143 = vld [vmem:[%s2 + $0xd0] sm:$0xff]
    %v144 = vld [vmem:[%s2 + $0xd8] sm:$0xff]
    %v145 = vld [vmem:[%s2 + $0xe0] sm:$0xff]
    %v146 = vld [vmem:[%s2 + $0xe8] sm:$0xff]
    %v147 = vld [vmem:[%s2 + $0xf0] sm:$0xff]
    %v148 = vld [vmem:[%s2 + $0xf8] sm:$0xff]
    %v149 = vld [vmem:[%s2 + $0x100] sm:$0xff]
    %v150 = vld [vmem:[%s2 + $0x108] sm:$0xff]
    %v151 = vld [vmem:[%s2 + $0x110] sm:$0xff]
    %v152 = vld [vmem:[%s2 + $0x118] sm:$0xff]
    %v153 = vld [vmem:[%s2 + $0x120] sm:$0xff]
    %v154 = vld [vmem:[%s2 + $0x128] sm:$0xff]
    %v155 = vld [vmem:[%s2 + $0x130] sm:$0xff]
    %v156 = vld [vmem:[%s2 + $0x138] sm:$0xff]
    %v157 = vld [vmem:[%s2 + $0x140] sm:$0xff]
    %v158 = vld [vmem:[%s2 + $0x148] sm:$0xff]
    %v159 = vld [vmem:[%s2 + $0x150] sm:$0xff]
    %v160 = vld [vmem:[%s2 + $0x158] sm:$0xff]
    %v161 = vld [vmem:[%s2 + $0x160] sm:$0xff]
    %v162 = vld [vmem:[%s2 + $0x168] sm:$0xff]
    %v163 = vld [vmem:[%s2 + $0x170] sm:$0xff]
    %v164 = vld [vmem:[%s2 + $0x178] sm:$0xff]
    %v165 = vld [vmem:[%s2 + $0x180] sm:$0xff]
    %v166 = vld [vmem:[%s2 + $0x188] sm:$0xff]
    %v167 = vld [vmem:[%s2 + $0x190] sm:$0xff]
    %v168 = vld [vmem:[%s2 + $0x198] sm:$0xff]
    %v169 = vld [vmem:[%s2 + $0x1a0] sm:$0xff]
    %v170 = vld [vmem:[%s2 + $0x1a8] sm:$0xff]
    %v171 = vld [vmem:[%s2 + $0x1b0] sm:$0xff]
    %v172 = vld [vmem:[%s2 + $0x1b8] sm:$0xff]
    %v173 = vld [vmem:[%s2 + $0x1c0] sm:$0xff]
    %v174 = vld [vmem:[%s2 + $0x1c8] sm:$0xff]
    %v175 = vld [vmem:[%s2 + $0x1d0] sm:$0xff]
    %v176 = vld [vmem:[%s2 + $0x1d8] sm:$0xff]
    %v177 = vld [vmem:[%s2 + $0x1e0] sm:$0xff]
    %v178 = vld [vmem:[%s2 + $0x1e8] sm:$0xff]
    %v179 = vld [vmem:[%s2 + $0x1f0] sm:$0xff]
    %v180 = vld [vmem:[%s2 + $0x1f8] sm:$0xff]
    %182 = vset.pattern.permute.xlu0 0
    %183 = vperm.xlu0 %182, %v117
    %v184 = vpop.permute.xlu0 %183
    %187 = vset.pattern.permute.xlu0 0
    %188 = vperm.xlu0 %187, %v118
    %v189 = vpop.permute.xlu0 %188
    %192 = vset.pattern.permute.xlu0 0
    %193 = vperm.xlu0 %192, %v119
    %v194 = vpop.permute.xlu0 %193
    %197 = vset.pattern.permute.xlu0 0
    %198 = vperm.xlu0 %197, %v120
    %v199 = vpop.permute.xlu0 %198
    %202 = vset.pattern.permute.xlu0 0
    %203 = vperm.xlu0 %202, %v121
    %v204 = vpop.permute.xlu0 %203
    %207 = vset.pattern.permute.xlu0 0
    %208 = vperm.xlu0 %207, %v122
    %v209 = vpop.permute.xlu0 %208
    %212 = vset.pattern.permute.xlu0 0
    %213 = vperm.xlu0 %212, %v123
    %v214 = vpop.permute.xlu0 %213
    %217 = vset.pattern.permute.xlu0 0
    %218 = vperm.xlu0 %217, %v124
    %v219 = vpop.permute.xlu0 %218
    %222 = vset.pattern.permute.xlu0 0
    %223 = vperm.xlu0 %222, %v125
    %v224 = vpop.permute.xlu0 %223
    %227 = vset.pattern.permute.xlu0 0
    %228 = vperm.xlu0 %227, %v126
    %v229 = vpop.permute.xlu0 %228
    %232 = vset.pattern.permute.xlu0 0
    %233 = vperm.xlu0 %232, %v127
    %v234 = vpop.permute.xlu0 %233
    %237 = vset.pattern.permute.xlu0 0
    %238 = vperm.xlu0 %237, %v128
    %v239 = vpop.permute.xlu0 %238
    %242 = vset.pattern.permute.xlu0 0
    %243 = vperm.xlu0 %242, %v129
    %v244 = vpop.permute.xlu0 %243
    %247 = vset.pattern.permute.xlu0 0
    %248 = vperm.xlu0 %247, %v130
    %v249 = vpop.permute.xlu0 %248
    %252 = vset.pattern.permute.xlu0 0
    %253 = vperm.xlu0 %252, %v131
    %v254 = vpop.permute.xlu0 %253
    %257 = vset.pattern.permute.xlu0 0
    %258 = vperm.xlu0 %257, %v132
    %v259 = vpop.permute.xlu0 %258
    %262 = vset.pattern.permute.xlu0 0
    %263 = vperm.xlu0 %262, %v133
    %v264 = vpop.permute.xlu0 %263
    %267 = vset.pattern.permute.xlu0 0
    %268 = vperm.xlu0 %267, %v134
    %v269 = vpop.permute.xlu0 %268
    %272 = vset.pattern.permute.xlu0 0
    %273 = vperm.xlu0 %272, %v135
    %v274 = vpop.permute.xlu0 %273
    %277 = vset.pattern.permute.xlu0 0
    %278 = vperm.xlu0 %277, %v136
    %v279 = vpop.permute.xlu0 %278
    %282 = vset.pattern.permute.xlu0 0
    %283 = vperm.xlu0 %282, %v137
    %v284 = vpop.permute.xlu0 %283
    %287 = vset.pattern.permute.xlu0 0
    %288 = vperm.xlu0 %287, %v138
    %v289 = vpop.permute.xlu0 %288
    %292 = vset.pattern.permute.xlu0 0
    %293 = vperm.xlu0 %292, %v139
    %v294 = vpop.permute.xlu0 %293
    %297 = vset.pattern.permute.xlu0 0
    %298 = vperm.xlu0 %297, %v140
    %v299 = vpop.permute.xlu0 %298
    %302 = vset.pattern.permute.xlu0 0
    %303 = vperm.xlu0 %302, %v141
    %v304 = vpop.permute.xlu0 %303
    %307 = vset.pattern.permute.xlu0 0
    %308 = vperm.xlu0 %307, %v142
    %v309 = vpop.permute.xlu0 %308
    %312 = vset.pattern.permute.xlu0 0
    %313 = vperm.xlu0 %312, %v143
    %v314 = vpop.permute.xlu0 %313
    %317 = vset.pattern.permute.xlu0 0
    %318 = vperm.xlu0 %317, %v144
    %v319 = vpop.permute.xlu0 %318
    %322 = vset.pattern.permute.xlu0 0
    %323 = vperm.xlu0 %322, %v145
    %v324 = vpop.permute.xlu0 %323
    %327 = vset.pattern.permute.xlu0 0
    %328 = vperm.xlu0 %327, %v146
    %v329 = vpop.permute.xlu0 %328
    %332 = vset.pattern.permute.xlu0 0
    %333 = vperm.xlu0 %332, %v147
    %v334 = vpop.permute.xlu0 %333
    %337 = vset.pattern.permute.xlu0 0
    %338 = vperm.xlu0 %337, %v148
    %v339 = vpop.permute.xlu0 %338
    %342 = vset.pattern.permute.xlu0 0
    %343 = vperm.xlu0 %342, %v149
    %v344 = vpop.permute.xlu0 %343
    %347 = vset.pattern.permute.xlu0 0
    %348 = vperm.xlu0 %347, %v150
    %v349 = vpop.permute.xlu0 %348
    %352 = vset.pattern.permute.xlu0 0
    %353 = vperm.xlu0 %352, %v151
    %v354 = vpop.permute.xlu0 %353
    %357 = vset.pattern.permute.xlu0 0
    %358 = vperm.xlu0 %357, %v152
    %v359 = vpop.permute.xlu0 %358
    %362 = vset.pattern.permute.xlu0 0
    %363 = vperm.xlu0 %362, %v153
    %v364 = vpop.permute.xlu0 %363
    %367 = vset.pattern.permute.xlu0 0
    %368 = vperm.xlu0 %367, %v154
    %v369 = vpop.permute.xlu0 %368
    %372 = vset.pattern.permute.xlu0 0
    %373 = vperm.xlu0 %372, %v155
    %v374 = vpop.permute.xlu0 %373
    %377 = vset.pattern.permute.xlu0 0
    %378 = vperm.xlu0 %377, %v156
    %v379 = vpop.permute.xlu0 %378
    %382 = vset.pattern.permute.xlu0 0
    %383 = vperm.xlu0 %382, %v157
    %v384 = vpop.permute.xlu0 %383
    %387 = vset.pattern.permute.xlu0 0
    %388 = vperm.xlu0 %387, %v158
    %v389 = vpop.permute.xlu0 %388
    %392 = vset.pattern.permute.xlu0 0
    %393 = vperm.xlu0 %392, %v159
    %v394 = vpop.permute.xlu0 %393
    %397 = vset.pattern.permute.xlu0 0
    %398 = vperm.xlu0 %397, %v160
    %v399 = vpop.permute.xlu0 %398
    %402 = vset.pattern.permute.xlu0 0
    %403 = vperm.xlu0 %402, %v161
    %v404 = vpop.permute.xlu0 %403
    %407 = vset.pattern.permute.xlu0 0
    %408 = vperm.xlu0 %407, %v162
    %v409 = vpop.permute.xlu0 %408
    %412 = vset.pattern.permute.xlu0 0
    %413 = vperm.xlu0 %412, %v163
    %v414 = vpop.permute.xlu0 %413
    %417 = vset.pattern.permute.xlu0 0
    %418 = vperm.xlu0 %417, %v164
    %v419 = vpop.permute.xlu0 %418
    %422 = vset.pattern.permute.xlu0 0
    %423 = vperm.xlu0 %422, %v165
    %v424 = vpop.permute.xlu0 %423
    %427 = vset.pattern.permute.xlu0 0
    %428 = vperm.xlu0 %427, %v166
    %v429 = vpop.permute.xlu0 %428
    %432 = vset.pattern.permute.xlu0 0
    %433 = vperm.xlu0 %432, %v167
    %v434 = vpop.permute.xlu0 %433
    %437 = vset.pattern.permute.xlu0 0
    %438 = vperm.xlu0 %437, %v168
    %v439 = vpop.permute.xlu0 %438
    %442 = vset.pattern.permute.xlu0 0
    %443 = vperm.xlu0 %442, %v169
    %v444 = vpop.permute.xlu0 %443
    %447 = vset.pattern.permute.xlu0 0
    %448 = vperm.xlu0 %447, %v170
    %v449 = vpop.permute.xlu0 %448
    %452 = vset.pattern.permute.xlu0 0
    %453 = vperm.xlu0 %452, %v171
    %v454 = vpop.permute.xlu0 %453
    %457 = vset.pattern.permute.xlu0 0
    %458 = vperm.xlu0 %457, %v172
    %v459 = vpop.permute.xlu0 %458
    %462 = vset.pattern.permute.xlu0 0
    %463 = vperm.xlu0 %462, %v173
    %v464 = vpop.permute.xlu0 %463
    %467 = vset.pattern.permute.xlu0 0
    %468 = vperm.xlu0 %467, %v174
    %v469 = vpop.permute.xlu0 %468
    %472 = vset.pattern.permute.xlu0 0
    %473 = vperm.xlu0 %472, %v175
    %v474 = vpop.permute.xlu0 %473
    %477 = vset.pattern.permute.xlu0 0
    %478 = vperm.xlu0 %477, %v176
    %v479 = vpop.permute.xlu0 %478
    %482 = vset.pattern.permute.xlu0 0
    %483 = vperm.xlu0 %482, %v177
    %v484 = vpop.permute.xlu0 %483
    %487 = vset.pattern.permute.xlu0 0
    %488 = vperm.xlu0 %487, %v178
    %v489 = vpop.permute.xlu0 %488
    %492 = vset.pattern.permute.xlu0 0
    %493 = vperm.xlu0 %492, %v179
    %v494 = vpop.permute.xlu0 %493
    %497 = vset.pattern.permute.xlu0 0
    %498 = vperm.xlu0 %497, %v180
    %v499 = vpop.permute.xlu0 %498
    %v565 = vunpack.c.l.b16 %v53
    %v566 = vunpack.c.l.b16 %v54
    %v567 = vunpack.c.l.b16 %v55
    %v568 = vunpack.c.l.b16 %v56
    %v569 = vunpack.c.l.b16 %v57
    %v570 = vunpack.c.l.b16 %v58
    %v571 = vunpack.c.l.b16 %v59
    %v572 = vunpack.c.l.b16 %v60
    %v573 = vunpack.c.l.b16 %v61
    %v574 = vunpack.c.l.b16 %v62
    %v575 = vunpack.c.l.b16 %v63
    %v576 = vunpack.c.l.b16 %v64
    %v577 = vunpack.c.l.b16 %v65
    %v578 = vunpack.c.l.b16 %v66
    %v579 = vunpack.c.l.b16 %v67
    %v580 = vunpack.c.l.b16 %v68
    %v581 = vunpack.c.l.b16 %v69
    %v582 = vunpack.c.l.b16 %v70
    %v583 = vunpack.c.l.b16 %v71
    %v584 = vunpack.c.l.b16 %v72
    %v585 = vunpack.c.l.b16 %v73
    %v586 = vunpack.c.l.b16 %v74
    %v587 = vunpack.c.l.b16 %v75
    %v588 = vunpack.c.l.b16 %v76
    %v589 = vunpack.c.l.b16 %v77
    %v590 = vunpack.c.l.b16 %v78
    %v591 = vunpack.c.l.b16 %v79
    %v592 = vunpack.c.l.b16 %v80
    %v593 = vunpack.c.l.b16 %v81
    %v594 = vunpack.c.l.b16 %v82
    %v595 = vunpack.c.l.b16 %v83
    %v596 = vunpack.c.l.b16 %v84
    %v597 = vunpack.c.l.b16 %v85
    %v598 = vunpack.c.l.b16 %v86
    %v599 = vunpack.c.l.b16 %v87
    %v600 = vunpack.c.l.b16 %v88
    %v601 = vunpack.c.l.b16 %v89
    %v602 = vunpack.c.l.b16 %v90
    %v603 = vunpack.c.l.b16 %v91
    %v604 = vunpack.c.l.b16 %v92
    %v605 = vunpack.c.l.b16 %v93
    %v606 = vunpack.c.l.b16 %v94
    %v607 = vunpack.c.l.b16 %v95
    %v608 = vunpack.c.l.b16 %v96
    %v609 = vunpack.c.l.b16 %v97
    %v610 = vunpack.c.l.b16 %v98
    %v611 = vunpack.c.l.b16 %v99
    %v612 = vunpack.c.l.b16 %v100
    %v613 = vunpack.c.l.b16 %v101
    %v614 = vunpack.c.l.b16 %v102
    %v615 = vunpack.c.l.b16 %v103
    %v616 = vunpack.c.l.b16 %v104
    %v617 = vunpack.c.l.b16 %v105
    %v618 = vunpack.c.l.b16 %v106
    %v619 = vunpack.c.l.b16 %v107
    %v620 = vunpack.c.l.b16 %v108
    %v621 = vunpack.c.l.b16 %v109
    %v622 = vunpack.c.l.b16 %v110
    %v623 = vunpack.c.l.b16 %v111
    %v624 = vunpack.c.l.b16 %v112
    %v625 = vunpack.c.l.b16 %v113
    %v626 = vunpack.c.l.b16 %v114
    %v627 = vunpack.c.l.b16 %v115
    %v628 = vunpack.c.l.b16 %v116
    %v629 = vpack.c.b16 %v566, %v565
    %v630 = vpack.c.b16 %v568, %v567
    %v631 = vpack.c.b16 %v570, %v569
    %v632 = vpack.c.b16 %v572, %v571
    %v633 = vpack.c.b16 %v574, %v573
    %v634 = vpack.c.b16 %v576, %v575
    %v635 = vpack.c.b16 %v578, %v577
    %v636 = vpack.c.b16 %v580, %v579
    %v637 = vpack.c.b16 %v582, %v581
    %v638 = vpack.c.b16 %v584, %v583
    %v639 = vpack.c.b16 %v586, %v585
    %v640 = vpack.c.b16 %v588, %v587
    %v641 = vpack.c.b16 %v590, %v589
    %v642 = vpack.c.b16 %v592, %v591
    %v643 = vpack.c.b16 %v594, %v593
    %v644 = vpack.c.b16 %v596, %v595
    %v645 = vpack.c.b16 %v598, %v597
    %v646 = vpack.c.b16 %v600, %v599
    %v647 = vpack.c.b16 %v602, %v601
    %v648 = vpack.c.b16 %v604, %v603
    %v649 = vpack.c.b16 %v606, %v605
    %v650 = vpack.c.b16 %v608, %v607
    %v651 = vpack.c.b16 %v610, %v609
    %v652 = vpack.c.b16 %v612, %v611
    %v653 = vpack.c.b16 %v614, %v613
    %v654 = vpack.c.b16 %v616, %v615
    %v655 = vpack.c.b16 %v618, %v617
    %v656 = vpack.c.b16 %v620, %v619
    %v657 = vpack.c.b16 %v622, %v621
    %v658 = vpack.c.b16 %v624, %v623
    %v659 = vpack.c.b16 %v626, %v625
    %v660 = vpack.c.b16 %v628, %v627
    %vm661 = vcmask 261120
    %v663 = vsel %vm661, %v629, 0
    %v666 = vsel %vm661, %v630, 0
    %v669 = vsel %vm661, %v631, 0
    %v672 = vsel %vm661, %v632, 0
    %v675 = vsel %vm661, %v633, 0
    %v678 = vsel %vm661, %v634, 0
    %v681 = vsel %vm661, %v635, 0
    %v684 = vsel %vm661, %v636, 0
    %v687 = vsel %vm661, %v637, 0
    %v690 = vsel %vm661, %v638, 0
    %v693 = vsel %vm661, %v639, 0
    %v696 = vsel %vm661, %v640, 0
    %v699 = vsel %vm661, %v641, 0
    %v702 = vsel %vm661, %v642, 0
    %v705 = vsel %vm661, %v643, 0
    %v708 = vsel %vm661, %v644, 0
    %v711 = vsel %vm661, %v645, 0
    %v714 = vsel %vm661, %v646, 0
    %v717 = vsel %vm661, %v647, 0
    %v720 = vsel %vm661, %v648, 0
    %v723 = vsel %vm661, %v649, 0
    %v726 = vsel %vm661, %v650, 0
    %v729 = vsel %vm661, %v651, 0
    %v732 = vsel %vm661, %v652, 0
    %v735 = vsel %vm661, %v653, 0
    %v738 = vsel %vm661, %v654, 0
    %v741 = vsel %vm661, %v655, 0
    %v744 = vsel %vm661, %v656, 0
    %v747 = vsel %vm661, %v657, 0
    %v750 = vsel %vm661, %v658, 0
    %v753 = vsel %vm661, %v659, 0
    %v756 = vsel %vm661, %v660, 0
    %v759 = vsel %vm661, %v45, 0
    %v762 = vsel %vm661, %v46, 0
    %v765 = vsel %vm661, %v47, 0
    %v768 = vsel %vm661, %v48, 0
    %v771 = vsel %vm661, %v49, 0
    %v774 = vsel %vm661, %v50, 0
    %v777 = vsel %vm661, %v51, 0
    %v780 = vsel %vm661, %v52, 0
    %782 = vmatprep.subr.bf16.mxu0 0
    %783 = vmatpush1.bf16.xpose.msra.mxu0 %v780
    %784 = vmatprep.subr.bf16.mxu0 0
    %785 = vmatpush1.bf16.xpose.msra.mxu0 %v777
    %786 = vmatprep.subr.bf16.mxu0 0
    %787 = vmatpush1.bf16.xpose.msra.mxu0 %v774
    %788 = vmatprep.subr.bf16.mxu0 0
    %789 = vmatpush1.bf16.xpose.msra.mxu0 %v771
    %790 = vmatprep.subr.bf16.mxu0 0
    %791 = vmatpush1.bf16.xpose.msra.mxu0 %v768
    %792 = vmatprep.subr.bf16.mxu0 0
    %793 = vmatpush1.bf16.xpose.msra.mxu0 %v765
    %794 = vmatprep.subr.bf16.mxu0 0
    %795 = vmatpush1.bf16.xpose.msra.mxu0 %v762
    %796 = vmatprep.subr.bf16.mxu0 0
    %797 = vmatpush1.bf16.xpose.msra.mxu0 %v759
    %798 = vmatprep.subr.bf16.mxu0 0
    %799 = vmatpush2.bf16.xpose.msra.mxu0 0
    %800 = vmatprep.subr.bf16.mxu0 0
    %801 = vmatpush2.bf16.xpose.msra.mxu0 0
    %802 = vmatprep.subr.bf16.mxu0 0
    %803 = vmatpush2.bf16.xpose.msra.mxu0 0
    %804 = vmatprep.subr.bf16.mxu0 0
    %805 = vmatpush2.bf16.xpose.msra.mxu0 0
    %806 = vmatprep.subr.bf16.mxu0 0
    %807 = vmatpush2.bf16.xpose.msra.mxu0 0
    %808 = vmatprep.subr.bf16.mxu0 0
    %809 = vmatpush2.bf16.xpose.msra.mxu0 0
    %810 = vmatprep.subr.bf16.mxu0 0
    %811 = vmatpush2.bf16.xpose.msra.mxu0 0
    %812 = vmatprep.subr.bf16.mxu0 0
    %813 = vmatpush2.bf16.xpose.msra.mxu0 0
    %814 = vmatprep.mubr.bf16.mxu0 0
    %815 = vmatmul.mubr.bf16.gmra.mxu0 %v663
    %v816 = vpop.f32.mrf.mxu0
    %v817 = vadd.f32 %v184, %v816
    %v818 = vpop.f32.mrf.mxu0
    %v819 = vpop.f32.mrf.mxu0
    %v820 = vadd.f32 %v189, %v819
    %v821 = vpop.f32.mrf.mxu0
    %822 = vmatprep.mubr.bf16.mxu0 0
    %823 = vmatmul.mubr.bf16.gmra.mxu0 %v666
    %v824 = vpop.f32.mrf.mxu0
    %v825 = vadd.f32 %v194, %v824
    %v826 = vpop.f32.mrf.mxu0
    %v827 = vpop.f32.mrf.mxu0
    %v828 = vadd.f32 %v199, %v827
    %v829 = vpop.f32.mrf.mxu0
    %830 = vmatprep.mubr.bf16.mxu0 0
    %831 = vmatmul.mubr.bf16.gmra.mxu0 %v669
    %v832 = vpop.f32.mrf.mxu0
    %v833 = vadd.f32 %v204, %v832
    %v834 = vpop.f32.mrf.mxu0
    %v835 = vpop.f32.mrf.mxu0
    %v836 = vadd.f32 %v209, %v835
    %v837 = vpop.f32.mrf.mxu0
    %838 = vmatprep.mubr.bf16.mxu0 0
    %839 = vmatmul.mubr.bf16.gmra.mxu0 %v672
    %v840 = vpop.f32.mrf.mxu0
    %v841 = vadd.f32 %v214, %v840
    %v842 = vpop.f32.mrf.mxu0
    %v843 = vpop.f32.mrf.mxu0
    %v844 = vadd.f32 %v219, %v843
    %v845 = vpop.f32.mrf.mxu0
    %846 = vmatprep.mubr.bf16.mxu0 0
    %847 = vmatmul.mubr.bf16.gmra.mxu0 %v675
    %v848 = vpop.f32.mrf.mxu0
    %v849 = vadd.f32 %v224, %v848
    %v850 = vpop.f32.mrf.mxu0
    %v851 = vpop.f32.mrf.mxu0
    %v852 = vadd.f32 %v229, %v851
    %v853 = vpop.f32.mrf.mxu0
    %854 = vmatprep.mubr.bf16.mxu0 0
    %855 = vmatmul.mubr.bf16.gmra.mxu0 %v678
    %v856 = vpop.f32.mrf.mxu0
    %v857 = vadd.f32 %v234, %v856
    %v858 = vpop.f32.mrf.mxu0
    %v859 = vpop.f32.mrf.mxu0
    %v860 = vadd.f32 %v239, %v859
    %v861 = vpop.f32.mrf.mxu0
    %862 = vmatprep.mubr.bf16.mxu0 0
    %863 = vmatmul.mubr.bf16.gmra.mxu0 %v681
    %v864 = vpop.f32.mrf.mxu0
    %v865 = vadd.f32 %v244, %v864
    %v866 = vpop.f32.mrf.mxu0
    %v867 = vpop.f32.mrf.mxu0
    %v868 = vadd.f32 %v249, %v867
    %v869 = vpop.f32.mrf.mxu0
    %870 = vmatprep.mubr.bf16.mxu0 0
    %871 = vmatmul.mubr.bf16.gmra.mxu0 %v684
    %v872 = vpop.f32.mrf.mxu0
    %v873 = vadd.f32 %v254, %v872
    %v874 = vpop.f32.mrf.mxu0
    %v875 = vpop.f32.mrf.mxu0
    %v876 = vadd.f32 %v259, %v875
    %v877 = vpop.f32.mrf.mxu0
    %878 = vmatprep.mubr.bf16.mxu0 0
    %879 = vmatmul.mubr.bf16.gmra.mxu0 %v687
    %v880 = vpop.f32.mrf.mxu0
    %v881 = vadd.f32 %v264, %v880
    %v882 = vpop.f32.mrf.mxu0
    %v883 = vpop.f32.mrf.mxu0
    %v884 = vadd.f32 %v269, %v883
    %v885 = vpop.f32.mrf.mxu0
    %886 = vmatprep.mubr.bf16.mxu0 0
    %887 = vmatmul.mubr.bf16.gmra.mxu0 %v690
    %v888 = vpop.f32.mrf.mxu0
    %v889 = vadd.f32 %v274, %v888
    %v890 = vpop.f32.mrf.mxu0
    %v891 = vpop.f32.mrf.mxu0
    %v892 = vadd.f32 %v279, %v891
    %v893 = vpop.f32.mrf.mxu0
    %894 = vmatprep.mubr.bf16.mxu0 0
    %895 = vmatmul.mubr.bf16.gmra.mxu0 %v693
    %v896 = vpop.f32.mrf.mxu0
    %v897 = vadd.f32 %v284, %v896
    %v898 = vpop.f32.mrf.mxu0
    %v899 = vpop.f32.mrf.mxu0
    %v900 = vadd.f32 %v289, %v899
    %v901 = vpop.f32.mrf.mxu0
    %902 = vmatprep.mubr.bf16.mxu0 0
    %903 = vmatmul.mubr.bf16.gmra.mxu0 %v696
    %v904 = vpop.f32.mrf.mxu0
    %v905 = vadd.f32 %v294, %v904
    %v906 = vpop.f32.mrf.mxu0
    %v907 = vpop.f32.mrf.mxu0
    %v908 = vadd.f32 %v299, %v907
    %v909 = vpop.f32.mrf.mxu0
    %910 = vmatprep.mubr.bf16.mxu0 0
    %911 = vmatmul.mubr.bf16.gmra.mxu0 %v699
    %v912 = vpop.f32.mrf.mxu0
    %v913 = vadd.f32 %v304, %v912
    %v914 = vpop.f32.mrf.mxu0
    %v915 = vpop.f32.mrf.mxu0
    %v916 = vadd.f32 %v309, %v915
    %v917 = vpop.f32.mrf.mxu0
    %918 = vmatprep.mubr.bf16.mxu0 0
    %919 = vmatmul.mubr.bf16.gmra.mxu0 %v702
    %v920 = vpop.f32.mrf.mxu0
    %v921 = vadd.f32 %v314, %v920
    %v922 = vpop.f32.mrf.mxu0
    %v923 = vpop.f32.mrf.mxu0
    %v924 = vadd.f32 %v319, %v923
    %v925 = vpop.f32.mrf.mxu0
    %926 = vmatprep.mubr.bf16.mxu0 0
    %927 = vmatmul.mubr.bf16.gmra.mxu0 %v705
    %v928 = vpop.f32.mrf.mxu0
    %v929 = vadd.f32 %v324, %v928
    %v930 = vpop.f32.mrf.mxu0
    %v931 = vpop.f32.mrf.mxu0
    %v932 = vadd.f32 %v329, %v931
    %v933 = vpop.f32.mrf.mxu0
    %934 = vmatprep.mubr.bf16.mxu0 0
    %935 = vmatmul.mubr.bf16.gmra.mxu0 %v708
    %v936 = vpop.f32.mrf.mxu0
    %v937 = vadd.f32 %v334, %v936
    %v938 = vpop.f32.mrf.mxu0
    %v939 = vpop.f32.mrf.mxu0
    %v940 = vadd.f32 %v339, %v939
    %v941 = vpop.f32.mrf.mxu0
    %942 = vmatprep.mubr.bf16.mxu0 0
    %943 = vmatmul.mubr.bf16.gmra.mxu0 %v711
    %v944 = vpop.f32.mrf.mxu0
    %v945 = vadd.f32 %v344, %v944
    %v946 = vpop.f32.mrf.mxu0
    %v947 = vpop.f32.mrf.mxu0
    %v948 = vadd.f32 %v349, %v947
    %v949 = vpop.f32.mrf.mxu0
    %950 = vmatprep.mubr.bf16.mxu0 0
    %951 = vmatmul.mubr.bf16.gmra.mxu0 %v714
    %v952 = vpop.f32.mrf.mxu0
    %v953 = vadd.f32 %v354, %v952
    %v954 = vpop.f32.mrf.mxu0
    %v955 = vpop.f32.mrf.mxu0
    %v956 = vadd.f32 %v359, %v955
    %v957 = vpop.f32.mrf.mxu0
    %958 = vmatprep.mubr.bf16.mxu0 0
    %959 = vmatmul.mubr.bf16.gmra.mxu0 %v717
    %v960 = vpop.f32.mrf.mxu0
    %v961 = vadd.f32 %v364, %v960
    %v962 = vpop.f32.mrf.mxu0
    %v963 = vpop.f32.mrf.mxu0
    %v964 = vadd.f32 %v369, %v963
    %v965 = vpop.f32.mrf.mxu0
    %966 = vmatprep.mubr.bf16.mxu0 0
    %967 = vmatmul.mubr.bf16.gmra.mxu0 %v720
    %v968 = vpop.f32.mrf.mxu0
    %v969 = vadd.f32 %v374, %v968
    %v970 = vpop.f32.mrf.mxu0
    %v971 = vpop.f32.mrf.mxu0
    %v972 = vadd.f32 %v379, %v971
    %v973 = vpop.f32.mrf.mxu0
    %974 = vmatprep.mubr.bf16.mxu0 0
    %975 = vmatmul.mubr.bf16.gmra.mxu0 %v723
    %v976 = vpop.f32.mrf.mxu0
    %v977 = vadd.f32 %v384, %v976
    %v978 = vpop.f32.mrf.mxu0
    %v979 = vpop.f32.mrf.mxu0
    %v980 = vadd.f32 %v389, %v979
    %v981 = vpop.f32.mrf.mxu0
    %982 = vmatprep.mubr.bf16.mxu0 0
    %983 = vmatmul.mubr.bf16.gmra.mxu0 %v726
    %v984 = vpop.f32.mrf.mxu0
    %v985 = vadd.f32 %v394, %v984
    %v986 = vpop.f32.mrf.mxu0
    %v987 = vpop.f32.mrf.mxu0
    %v988 = vadd.f32 %v399, %v987
    %v989 = vpop.f32.mrf.mxu0
    %990 = vmatprep.mubr.bf16.mxu0 0
    %991 = vmatmul.mubr.bf16.gmra.mxu0 %v729
    %v992 = vpop.f32.mrf.mxu0
    %v993 = vadd.f32 %v404, %v992
    %v994 = vpop.f32.mrf.mxu0
    %v995 = vpop.f32.mrf.mxu0
    %v996 = vadd.f32 %v409, %v995
    %v997 = vpop.f32.mrf.mxu0
    %998 = vmatprep.mubr.bf16.mxu0 0
    %999 = vmatmul.mubr.bf16.gmra.mxu0 %v732
    %v1000 = vpop.f32.mrf.mxu0
    %v1001 = vadd.f32 %v414, %v1000
    %v1002 = vpop.f32.mrf.mxu0
    %v1003 = vpop.f32.mrf.mxu0
    %v1004 = vadd.f32 %v419, %v1003
    %v1005 = vpop.f32.mrf.mxu0
    %1006 = vmatprep.mubr.bf16.mxu0 0
    %1007 = vmatmul.mubr.bf16.gmra.mxu0 %v735
    %v1008 = vpop.f32.mrf.mxu0
    %v1009 = vadd.f32 %v424, %v1008
    %v1010 = vpop.f32.mrf.mxu0
    %v1011 = vpop.f32.mrf.mxu0
    %v1012 = vadd.f32 %v429, %v1011
    %v1013 = vpop.f32.mrf.mxu0
    %1014 = vmatprep.mubr.bf16.mxu0 0
    %1015 = vmatmul.mubr.bf16.gmra.mxu0 %v738
    %v1016 = vpop.f32.mrf.mxu0
    %v1017 = vadd.f32 %v434, %v1016
    %v1018 = vpop.f32.mrf.mxu0
    %v1019 = vpop.f32.mrf.mxu0
    %v1020 = vadd.f32 %v439, %v1019
    %v1021 = vpop.f32.mrf.mxu0
    %1022 = vmatprep.mubr.bf16.mxu0 0
    %1023 = vmatmul.mubr.bf16.gmra.mxu0 %v741
    %v1024 = vpop.f32.mrf.mxu0
    %v1025 = vadd.f32 %v444, %v1024
    %v1026 = vpop.f32.mrf.mxu0
    %v1027 = vpop.f32.mrf.mxu0
    %v1028 = vadd.f32 %v449, %v1027
    %v1029 = vpop.f32.mrf.mxu0
    %1030 = vmatprep.mubr.bf16.mxu0 0
    %1031 = vmatmul.mubr.bf16.gmra.mxu0 %v744
    %v1032 = vpop.f32.mrf.mxu0
    %v1033 = vadd.f32 %v454, %v1032
    %v1034 = vpop.f32.mrf.mxu0
    %v1035 = vpop.f32.mrf.mxu0
    %v1036 = vadd.f32 %v459, %v1035
    %v1037 = vpop.f32.mrf.mxu0
    %1038 = vmatprep.mubr.bf16.mxu0 0
    %1039 = vmatmul.mubr.bf16.gmra.mxu0 %v747
    %v1040 = vpop.f32.mrf.mxu0
    %v1041 = vadd.f32 %v464, %v1040
    %v1042 = vpop.f32.mrf.mxu0
    %v1043 = vpop.f32.mrf.mxu0
    %v1044 = vadd.f32 %v469, %v1043
    %v1045 = vpop.f32.mrf.mxu0
    %1046 = vmatprep.mubr.bf16.mxu0 0
    %1047 = vmatmul.mubr.bf16.gmra.mxu0 %v750
    %v1048 = vpop.f32.mrf.mxu0
    %v1049 = vadd.f32 %v474, %v1048
    %v1050 = vpop.f32.mrf.mxu0
    %v1051 = vpop.f32.mrf.mxu0
    %v1052 = vadd.f32 %v479, %v1051
    %v1053 = vpop.f32.mrf.mxu0
    %1054 = vmatprep.mubr.bf16.mxu0 0
    %1055 = vmatmul.mubr.bf16.gmra.mxu0 %v753
    %v1056 = vpop.f32.mrf.mxu0
    %v1057 = vadd.f32 %v484, %v1056
    %v1058 = vpop.f32.mrf.mxu0
    %v1059 = vpop.f32.mrf.mxu0
    %v1060 = vadd.f32 %v489, %v1059
    %v1061 = vpop.f32.mrf.mxu0
    %1062 = vmatprep.mubr.bf16.mxu0 0
    %1063 = vmatmul.mubr.bf16.gmra.mxu0 %v756
    %v1064 = vpop.f32.mrf.mxu0
    %v1065 = vadd.f32 %v494, %v1064
    %v1066 = vpop.f32.mrf.mxu0
    %v1067 = vpop.f32.mrf.mxu0
    %v1068 = vadd.f32 %v499, %v1067
    %v1069 = vpop.f32.mrf.mxu0
    %1070 = vdwg.mxu0
    %v1071 = vmax.f32 %v817, 0.0
    %v1072 = vmax.f32 %v820, 0.0
    %v1073 = vmax.f32 %v825, 0.0
    %v1074 = vmax.f32 %v828, 0.0
    %v1075 = vmax.f32 %v833, 0.0
    %v1076 = vmax.f32 %v836, 0.0
    %v1077 = vmax.f32 %v841, 0.0
    %v1078 = vmax.f32 %v844, 0.0
    %v1079 = vmax.f32 %v849, 0.0
    %v1080 = vmax.f32 %v852, 0.0
    %v1081 = vmax.f32 %v857, 0.0
    %v1082 = vmax.f32 %v860, 0.0
    %v1083 = vmax.f32 %v865, 0.0
    %v1084 = vmax.f32 %v868, 0.0
    %v1085 = vmax.f32 %v873, 0.0
    %v1086 = vmax.f32 %v876, 0.0
    %v1087 = vmax.f32 %v881, 0.0
    %v1088 = vmax.f32 %v884, 0.0
    %v1089 = vmax.f32 %v889, 0.0
    %v1090 = vmax.f32 %v892, 0.0
    %v1091 = vmax.f32 %v897, 0.0
    %v1092 = vmax.f32 %v900, 0.0
    %v1093 = vmax.f32 %v905, 0.0
    %v1094 = vmax.f32 %v908, 0.0
    %v1095 = vmax.f32 %v913, 0.0
    %v1096 = vmax.f32 %v916, 0.0
    %v1097 = vmax.f32 %v921, 0.0
    %v1098 = vmax.f32 %v924, 0.0
    %v1099 = vmax.f32 %v929, 0.0
    %v1100 = vmax.f32 %v932, 0.0
    %v1101 = vmax.f32 %v937, 0.0
    %v1102 = vmax.f32 %v940, 0.0
    %v1103 = vmax.f32 %v945, 0.0
    %v1104 = vmax.f32 %v948, 0.0
    %v1105 = vmax.f32 %v953, 0.0
    %v1106 = vmax.f32 %v956, 0.0
    %v1107 = vmax.f32 %v961, 0.0
    %v1108 = vmax.f32 %v964, 0.0
    %v1109 = vmax.f32 %v969, 0.0
    %v1110 = vmax.f32 %v972, 0.0
    %v1111 = vmax.f32 %v977, 0.0
    %v1112 = vmax.f32 %v980, 0.0
    %v1113 = vmax.f32 %v985, 0.0
    %v1114 = vmax.f32 %v988, 0.0
    %v1115 = vmax.f32 %v993, 0.0
    %v1116 = vmax.f32 %v996, 0.0
    %v1117 = vmax.f32 %v1001, 0.0
    %v1118 = vmax.f32 %v1004, 0.0
    %v1119 = vmax.f32 %v1009, 0.0
    %v1120 = vmax.f32 %v1012, 0.0
    %v1121 = vmax.f32 %v1017, 0.0
    %v1122 = vmax.f32 %v1020, 0.0
    %v1123 = vmax.f32 %v1025, 0.0
    %v1124 = vmax.f32 %v1028, 0.0
    %v1125 = vmax.f32 %v1033, 0.0
    %v1126 = vmax.f32 %v1036, 0.0
    %v1127 = vmax.f32 %v1041, 0.0
    %v1128 = vmax.f32 %v1044, 0.0
    %v1129 = vmax.f32 %v1049, 0.0
    %v1130 = vmax.f32 %v1052, 0.0
    %v1131 = vmax.f32 %v1057, 0.0
    %v1132 = vmax.f32 %v1060, 0.0
    %v1133 = vmax.f32 %v1065, 0.0
    %v1134 = vmax.f32 %v1068, 0.0
    %v1135 = vpack.c.bf16 %v1072, %v1071
    %v1136 = vpack.c.bf16 %v1074, %v1073
    %v1137 = vpack.c.bf16 %v1076, %v1075
    %v1138 = vpack.c.bf16 %v1078, %v1077
    %v1139 = vpack.c.bf16 %v1080, %v1079
    %v1140 = vpack.c.bf16 %v1082, %v1081
    %v1141 = vpack.c.bf16 %v1084, %v1083
    %v1142 = vpack.c.bf16 %v1086, %v1085
    %v1143 = vpack.c.bf16 %v1088, %v1087
    %v1144 = vpack.c.bf16 %v1090, %v1089
    %v1145 = vpack.c.bf16 %v1092, %v1091
    %v1146 = vpack.c.bf16 %v1094, %v1093
    %v1147 = vpack.c.bf16 %v1096, %v1095
    %v1148 = vpack.c.bf16 %v1098, %v1097
    %v1149 = vpack.c.bf16 %v1100, %v1099
    %v1150 = vpack.c.bf16 %v1102, %v1101
    %v1151 = vpack.c.bf16 %v1104, %v1103
    %v1152 = vpack.c.bf16 %v1106, %v1105
    %v1153 = vpack.c.bf16 %v1108, %v1107
    %v1154 = vpack.c.bf16 %v1110, %v1109
    %v1155 = vpack.c.bf16 %v1112, %v1111
    %v1156 = vpack.c.bf16 %v1114, %v1113
    %v1157 = vpack.c.bf16 %v1116, %v1115
    %v1158 = vpack.c.bf16 %v1118, %v1117
    %v1159 = vpack.c.bf16 %v1120, %v1119
    %v1160 = vpack.c.bf16 %v1122, %v1121
    %v1161 = vpack.c.bf16 %v1124, %v1123
    %v1162 = vpack.c.bf16 %v1126, %v1125
    %v1163 = vpack.c.bf16 %v1128, %v1127
    %v1164 = vpack.c.bf16 %v1130, %v1129
    %v1165 = vpack.c.bf16 %v1132, %v1131
    %v1166 = vpack.c.bf16 %v1134, %v1133
    %v1167 = vld [vmem:[%s3] sm:$0xff]
    %v1168 = vld [vmem:[%s3 + $0x8] sm:$0xff]
    %v1169 = vld [vmem:[%s3 + $0x10] sm:$0xff]
    %v1170 = vld [vmem:[%s3 + $0x18] sm:$0xff]
    %v1171 = vld [vmem:[%s3 + $0x20] sm:$0xff]
    %v1172 = vld [vmem:[%s3 + $0x28] sm:$0xff]
    %v1173 = vld [vmem:[%s3 + $0x30] sm:$0xff]
    %v1174 = vld [vmem:[%s3 + $0x38] sm:$0xff]
    %v1175 = vld [vmem:[%s3 + $0x40] sm:$0xff]
    %v1176 = vld [vmem:[%s3 + $0x48] sm:$0xff]
    %v1177 = vld [vmem:[%s3 + $0x50] sm:$0xff]
    %v1178 = vld [vmem:[%s3 + $0x58] sm:$0xff]
    %v1179 = vld [vmem:[%s3 + $0x60] sm:$0xff]
    %v1180 = vld [vmem:[%s3 + $0x68] sm:$0xff]
    %v1181 = vld [vmem:[%s3 + $0x70] sm:$0xff]
    %v1182 = vld [vmem:[%s3 + $0x78] sm:$0xff]
    %v1183 = vld [vmem:[%s3 + $0x80] sm:$0xff]
    %v1184 = vld [vmem:[%s3 + $0x88] sm:$0xff]
    %v1185 = vld [vmem:[%s3 + $0x90] sm:$0xff]
    %v1186 = vld [vmem:[%s3 + $0x98] sm:$0xff]
    %v1187 = vld [vmem:[%s3 + $0xa0] sm:$0xff]
    %v1188 = vld [vmem:[%s3 + $0xa8] sm:$0xff]
    %v1189 = vld [vmem:[%s3 + $0xb0] sm:$0xff]
    %v1190 = vld [vmem:[%s3 + $0xb8] sm:$0xff]
    %v1191 = vld [vmem:[%s3 + $0xc0] sm:$0xff]
    %v1192 = vld [vmem:[%s3 + $0xc8] sm:$0xff]
    %v1193 = vld [vmem:[%s3 + $0xd0] sm:$0xff]
    %v1194 = vld [vmem:[%s3 + $0xd8] sm:$0xff]
    %v1195 = vld [vmem:[%s3 + $0xe0] sm:$0xff]
    %v1196 = vld [vmem:[%s3 + $0xe8] sm:$0xff]
    %v1197 = vld [vmem:[%s3 + $0xf0] sm:$0xff]
    %v1198 = vld [vmem:[%s3 + $0xf8] sm:$0xff]
    %v1199 = vld [vmem:[%s4] sm:$0xff]
    %v1200 = vld [vmem:[%s4 + $0x8] sm:$0xff]
    %v1201 = vld [vmem:[%s4 + $0x10] sm:$0xff]
    %v1202 = vld [vmem:[%s4 + $0x18] sm:$0xff]
    %v1203 = vld [vmem:[%s4 + $0x20] sm:$0xff]
    %v1204 = vld [vmem:[%s4 + $0x28] sm:$0xff]
    %v1205 = vld [vmem:[%s4 + $0x30] sm:$0xff]
    %v1206 = vld [vmem:[%s4 + $0x38] sm:$0xff]
    %v1207 = vld [vmem:[%s4 + $0x40] sm:$0xff]
    %v1208 = vld [vmem:[%s4 + $0x48] sm:$0xff]
    %v1209 = vld [vmem:[%s4 + $0x50] sm:$0xff]
    %v1210 = vld [vmem:[%s4 + $0x58] sm:$0xff]
    %v1211 = vld [vmem:[%s4 + $0x60] sm:$0xff]
    %v1212 = vld [vmem:[%s4 + $0x68] sm:$0xff]
    %v1213 = vld [vmem:[%s4 + $0x70] sm:$0xff]
    %v1214 = vld [vmem:[%s4 + $0x78] sm:$0xff]
    %1216 = vset.pattern.permute.xlu0 0
    %1217 = vperm.xlu0 %1216, %v1199
    %v1218 = vpop.permute.xlu0 %1217
    %1221 = vset.pattern.permute.xlu0 0
    %1222 = vperm.xlu0 %1221, %v1200
    %v1223 = vpop.permute.xlu0 %1222
    %1226 = vset.pattern.permute.xlu0 0
    %1227 = vperm.xlu0 %1226, %v1201
    %v1228 = vpop.permute.xlu0 %1227
    %1231 = vset.pattern.permute.xlu0 0
    %1232 = vperm.xlu0 %1231, %v1202
    %v1233 = vpop.permute.xlu0 %1232
    %1236 = vset.pattern.permute.xlu0 0
    %1237 = vperm.xlu0 %1236, %v1203
    %v1238 = vpop.permute.xlu0 %1237
    %1241 = vset.pattern.permute.xlu0 0
    %1242 = vperm.xlu0 %1241, %v1204
    %v1243 = vpop.permute.xlu0 %1242
    %1246 = vset.pattern.permute.xlu0 0
    %1247 = vperm.xlu0 %1246, %v1205
    %v1248 = vpop.permute.xlu0 %1247
    %1251 = vset.pattern.permute.xlu0 0
    %1252 = vperm.xlu0 %1251, %v1206
    %v1253 = vpop.permute.xlu0 %1252
    %1256 = vset.pattern.permute.xlu0 0
    %1257 = vperm.xlu0 %1256, %v1207
    %v1258 = vpop.permute.xlu0 %1257
    %1261 = vset.pattern.permute.xlu0 0
    %1262 = vperm.xlu0 %1261, %v1208
    %v1263 = vpop.permute.xlu0 %1262
    %1266 = vset.pattern.permute.xlu0 0
    %1267 = vperm.xlu0 %1266, %v1209
    %v1268 = vpop.permute.xlu0 %1267
    %1271 = vset.pattern.permute.xlu0 0
    %1272 = vperm.xlu0 %1271, %v1210
    %v1273 = vpop.permute.xlu0 %1272
    %1276 = vset.pattern.permute.xlu0 0
    %1277 = vperm.xlu0 %1276, %v1211
    %v1278 = vpop.permute.xlu0 %1277
    %1281 = vset.pattern.permute.xlu0 0
    %1282 = vperm.xlu0 %1281, %v1212
    %v1283 = vpop.permute.xlu0 %1282
    %1286 = vset.pattern.permute.xlu0 0
    %1287 = vperm.xlu0 %1286, %v1213
    %v1288 = vpop.permute.xlu0 %1287
    %1291 = vset.pattern.permute.xlu0 0
    %1292 = vperm.xlu0 %1291, %v1214
    %v1293 = vpop.permute.xlu0 %1292
    %v1327 = vunpack.c.l.b16 %v1167
    %v1328 = vunpack.c.h.b16 %v1167
    %v1329 = vunpack.c.l.b16 %v1168
    %v1330 = vunpack.c.h.b16 %v1168
    %v1331 = vunpack.c.l.b16 %v1169
    %v1332 = vunpack.c.h.b16 %v1169
    %v1333 = vunpack.c.l.b16 %v1170
    %v1334 = vunpack.c.h.b16 %v1170
    %v1335 = vunpack.c.l.b16 %v1171
    %v1336 = vunpack.c.h.b16 %v1171
    %v1337 = vunpack.c.l.b16 %v1172
    %v1338 = vunpack.c.h.b16 %v1172
    %v1339 = vunpack.c.l.b16 %v1173
    %v1340 = vunpack.c.h.b16 %v1173
    %v1341 = vunpack.c.l.b16 %v1174
    %v1342 = vunpack.c.h.b16 %v1174
    %v1343 = vunpack.c.l.b16 %v1175
    %v1344 = vunpack.c.h.b16 %v1175
    %v1345 = vunpack.c.l.b16 %v1176
    %v1346 = vunpack.c.h.b16 %v1176
    %v1347 = vunpack.c.l.b16 %v1177
    %v1348 = vunpack.c.h.b16 %v1177
    %v1349 = vunpack.c.l.b16 %v1178
    %v1350 = vunpack.c.h.b16 %v1178
    %v1351 = vunpack.c.l.b16 %v1179
    %v1352 = vunpack.c.h.b16 %v1179
    %v1353 = vunpack.c.l.b16 %v1180
    %v1354 = vunpack.c.h.b16 %v1180
    %v1355 = vunpack.c.l.b16 %v1181
    %v1356 = vunpack.c.h.b16 %v1181
    %v1357 = vunpack.c.l.b16 %v1182
    %v1358 = vunpack.c.h.b16 %v1182
    %v1359 = vunpack.c.l.b16 %v1183
    %v1360 = vunpack.c.h.b16 %v1183
    %v1361 = vunpack.c.l.b16 %v1184
    %v1362 = vunpack.c.h.b16 %v1184
    %v1363 = vunpack.c.l.b16 %v1185
    %v1364 = vunpack.c.h.b16 %v1185
    %v1365 = vunpack.c.l.b16 %v1186
    %v1366 = vunpack.c.h.b16 %v1186
    %v1367 = vunpack.c.l.b16 %v1187
    %v1368 = vunpack.c.h.b16 %v1187
    %v1369 = vunpack.c.l.b16 %v1188
    %v1370 = vunpack.c.h.b16 %v1188
    %v1371 = vunpack.c.l.b16 %v1189
    %v1372 = vunpack.c.h.b16 %v1189
    %v1373 = vunpack.c.l.b16 %v1190
    %v1374 = vunpack.c.h.b16 %v1190
    %v1375 = vunpack.c.l.b16 %v1191
    %v1376 = vunpack.c.h.b16 %v1191
    %v1377 = vunpack.c.l.b16 %v1192
    %v1378 = vunpack.c.h.b16 %v1192
    %v1379 = vunpack.c.l.b16 %v1193
    %v1380 = vunpack.c.h.b16 %v1193
    %v1381 = vunpack.c.l.b16 %v1194
    %v1382 = vunpack.c.h.b16 %v1194
    %v1383 = vunpack.c.l.b16 %v1195
    %v1384 = vunpack.c.h.b16 %v1195
    %v1385 = vunpack.c.l.b16 %v1196
    %v1386 = vunpack.c.h.b16 %v1196
    %v1387 = vunpack.c.l.b16 %v1197
    %v1388 = vunpack.c.h.b16 %v1197
    %v1389 = vunpack.c.l.b16 %v1198
    %v1390 = vunpack.c.h.b16 %v1198
    %v1391 = vpack.c.b16 %v1331, %v1327
    %v1392 = vpack.c.b16 %v1332, %v1328
    %v1393 = vpack.c.b16 %v1333, %v1329
    %v1394 = vpack.c.b16 %v1334, %v1330
    %v1395 = vpack.c.b16 %v1339, %v1335
    %v1396 = vpack.c.b16 %v1340, %v1336
    %v1397 = vpack.c.b16 %v1341, %v1337
    %v1398 = vpack.c.b16 %v1342, %v1338
    %v1399 = vpack.c.b16 %v1347, %v1343
    %v1400 = vpack.c.b16 %v1348, %v1344
    %v1401 = vpack.c.b16 %v1349, %v1345
    %v1402 = vpack.c.b16 %v1350, %v1346
    %v1403 = vpack.c.b16 %v1355, %v1351
    %v1404 = vpack.c.b16 %v1356, %v1352
    %v1405 = vpack.c.b16 %v1357, %v1353
    %v1406 = vpack.c.b16 %v1358, %v1354
    %v1407 = vpack.c.b16 %v1363, %v1359
    %v1408 = vpack.c.b16 %v1364, %v1360
    %v1409 = vpack.c.b16 %v1365, %v1361
    %v1410 = vpack.c.b16 %v1366, %v1362
    %v1411 = vpack.c.b16 %v1371, %v1367
    %v1412 = vpack.c.b16 %v1372, %v1368
    %v1413 = vpack.c.b16 %v1373, %v1369
    %v1414 = vpack.c.b16 %v1374, %v1370
    %v1415 = vpack.c.b16 %v1379, %v1375
    %v1416 = vpack.c.b16 %v1380, %v1376
    %v1417 = vpack.c.b16 %v1381, %v1377
    %v1418 = vpack.c.b16 %v1382, %v1378
    %v1419 = vpack.c.b16 %v1387, %v1383
    %v1420 = vpack.c.b16 %v1388, %v1384
    %v1421 = vpack.c.b16 %v1389, %v1385
    %v1422 = vpack.c.b16 %v1390, %v1386
    %1455 = vmatprep.subr.bf16.mxu0 0
    %1456 = vmatpush1.bf16.msra.mxu0 %v1142
    %1457 = vmatprep.subr.bf16.mxu0 0
    %1458 = vmatpush1.bf16.msra.mxu0 %v1141
    %1459 = vmatprep.subr.bf16.mxu0 0
    %1460 = vmatpush1.bf16.msra.mxu0 %v1140
    %1461 = vmatprep.subr.bf16.mxu0 0
    %1462 = vmatpush1.bf16.msra.mxu0 %v1139
    %1463 = vmatprep.subr.bf16.mxu0 0
    %1464 = vmatpush1.bf16.msra.mxu0 %v1138
    %1465 = vmatprep.subr.bf16.mxu0 0
    %1466 = vmatpush1.bf16.msra.mxu0 %v1137
    %1467 = vmatprep.subr.bf16.mxu0 0
    %1468 = vmatpush1.bf16.msra.mxu0 %v1136
    %1469 = vmatprep.subr.bf16.mxu0 0
    %1470 = vmatpush1.bf16.msra.mxu0 %v1135
    %1471 = vmatprep.subr.bf16.mxu0 0
    %1472 = vmatpush2.bf16.msra.mxu0 %v1150
    %1473 = vmatprep.subr.bf16.mxu0 0
    %1474 = vmatpush2.bf16.msra.mxu0 %v1149
    %1475 = vmatprep.subr.bf16.mxu0 0
    %1476 = vmatpush2.bf16.msra.mxu0 %v1148
    %1477 = vmatprep.subr.bf16.mxu0 0
    %1478 = vmatpush2.bf16.msra.mxu0 %v1147
    %1479 = vmatprep.subr.bf16.mxu0 0
    %1480 = vmatpush2.bf16.msra.mxu0 %v1146
    %1481 = vmatprep.subr.bf16.mxu0 0
    %1482 = vmatpush2.bf16.msra.mxu0 %v1145
    %1483 = vmatprep.subr.bf16.mxu0 0
    %1484 = vmatpush2.bf16.msra.mxu0 %v1144
    %1485 = vmatprep.subr.bf16.mxu0 0
    %1486 = vmatpush2.bf16.msra.mxu0 %v1143
    %1487 = vmatprep.mubr.bf16.mxu0 %v1392
    %1488 = vmatmul.mubr.bf16.gmra.mxu0 %v1391
    %v1489 = vpop.f32.mrf.mxu0
    %v1490 = vadd.f32 %v1218, %v1489
    %v1491 = vpop.f32.mrf.mxu0
    %v1492 = vpop.f32.mrf.mxu0
    %v1493 = vadd.f32 %v1223, %v1492
    %v1494 = vpop.f32.mrf.mxu0
    %1495 = vmatprep.mubr.bf16.mxu0 %v1396
    %1496 = vmatmul.mubr.bf16.gmra.mxu0 %v1395
    %v1497 = vpop.f32.mrf.mxu0
    %v1498 = vadd.f32 %v1228, %v1497
    %v1499 = vpop.f32.mrf.mxu0
    %v1500 = vpop.f32.mrf.mxu0
    %v1501 = vadd.f32 %v1233, %v1500
    %v1502 = vpop.f32.mrf.mxu0
    %1503 = vmatprep.mubr.bf16.mxu0 %v1400
    %1504 = vmatmul.mubr.bf16.gmra.mxu0 %v1399
    %v1505 = vpop.f32.mrf.mxu0
    %v1506 = vadd.f32 %v1238, %v1505
    %v1507 = vpop.f32.mrf.mxu0
    %v1508 = vpop.f32.mrf.mxu0
    %v1509 = vadd.f32 %v1243, %v1508
    %v1510 = vpop.f32.mrf.mxu0
    %1511 = vmatprep.mubr.bf16.mxu0 %v1404
    %1512 = vmatmul.mubr.bf16.gmra.mxu0 %v1403
    %v1513 = vpop.f32.mrf.mxu0
    %v1514 = vadd.f32 %v1248, %v1513
    %v1515 = vpop.f32.mrf.mxu0
    %v1516 = vpop.f32.mrf.mxu0
    %v1517 = vadd.f32 %v1253, %v1516
    %v1518 = vpop.f32.mrf.mxu0
    %1519 = vmatprep.mubr.bf16.mxu0 %v1408
    %1520 = vmatmul.mubr.bf16.gmra.mxu0 %v1407
    %v1521 = vpop.f32.mrf.mxu0
    %v1522 = vadd.f32 %v1258, %v1521
    %v1523 = vpop.f32.mrf.mxu0
    %v1524 = vpop.f32.mrf.mxu0
    %v1525 = vadd.f32 %v1263, %v1524
    %v1526 = vpop.f32.mrf.mxu0
    %1527 = vmatprep.mubr.bf16.mxu0 %v1412
    %1528 = vmatmul.mubr.bf16.gmra.mxu0 %v1411
    %v1529 = vpop.f32.mrf.mxu0
    %v1530 = vadd.f32 %v1268, %v1529
    %v1531 = vpop.f32.mrf.mxu0
    %v1532 = vpop.f32.mrf.mxu0
    %v1533 = vadd.f32 %v1273, %v1532
    %v1534 = vpop.f32.mrf.mxu0
    %1535 = vmatprep.mubr.bf16.mxu0 %v1416
    %1536 = vmatmul.mubr.bf16.gmra.mxu0 %v1415
    %v1537 = vpop.f32.mrf.mxu0
    %v1538 = vadd.f32 %v1278, %v1537
    %v1539 = vpop.f32.mrf.mxu0
    %v1540 = vpop.f32.mrf.mxu0
    %v1541 = vadd.f32 %v1283, %v1540
    %v1542 = vpop.f32.mrf.mxu0
    %1543 = vmatprep.mubr.bf16.mxu0 %v1420
    %1544 = vmatmul.mubr.bf16.gmra.mxu0 %v1419
    %v1545 = vpop.f32.mrf.mxu0
    %v1546 = vadd.f32 %v1288, %v1545
    %v1547 = vpop.f32.mrf.mxu0
    %v1548 = vpop.f32.mrf.mxu0
    %v1549 = vadd.f32 %v1293, %v1548
    %v1550 = vpop.f32.mrf.mxu0
    %1551 = vdwg.mxu0
    %1552 = vmatprep.subr.bf16.mxu0 0
    %1553 = vmatpush1.bf16.msra.mxu0 %v1158
    %1554 = vmatprep.subr.bf16.mxu0 0
    %1555 = vmatpush1.bf16.msra.mxu0 %v1157
    %1556 = vmatprep.subr.bf16.mxu0 0
    %1557 = vmatpush1.bf16.msra.mxu0 %v1156
    %1558 = vmatprep.subr.bf16.mxu0 0
    %1559 = vmatpush1.bf16.msra.mxu0 %v1155
    %1560 = vmatprep.subr.bf16.mxu0 0
    %1561 = vmatpush1.bf16.msra.mxu0 %v1154
    %1562 = vmatprep.subr.bf16.mxu0 0
    %1563 = vmatpush1.bf16.msra.mxu0 %v1153
    %1564 = vmatprep.subr.bf16.mxu0 0
    %1565 = vmatpush1.bf16.msra.mxu0 %v1152
    %1566 = vmatprep.subr.bf16.mxu0 0
    %1567 = vmatpush1.bf16.msra.mxu0 %v1151
    %1568 = vmatprep.subr.bf16.mxu0 0
    %1569 = vmatpush2.bf16.msra.mxu0 %v1166
    %1570 = vmatprep.subr.bf16.mxu0 0
    %1571 = vmatpush2.bf16.msra.mxu0 %v1165
    %1572 = vmatprep.subr.bf16.mxu0 0
    %1573 = vmatpush2.bf16.msra.mxu0 %v1164
    %1574 = vmatprep.subr.bf16.mxu0 0
    %1575 = vmatpush2.bf16.msra.mxu0 %v1163
    %1576 = vmatprep.subr.bf16.mxu0 0
    %1577 = vmatpush2.bf16.msra.mxu0 %v1162
    %1578 = vmatprep.subr.bf16.mxu0 0
    %1579 = vmatpush2.bf16.msra.mxu0 %v1161
    %1580 = vmatprep.subr.bf16.mxu0 0
    %1581 = vmatpush2.bf16.msra.mxu0 %v1160
    %1582 = vmatprep.subr.bf16.mxu0 0
    %1583 = vmatpush2.bf16.msra.mxu0 %v1159
    %1584 = vmatprep.mubr.bf16.mxu0 %v1394
    %1585 = vmatmul.mubr.bf16.gmra.mxu0 %v1393
    %v1586 = vpop.f32.mrf.mxu0
    %v1587 = vadd.f32 %v1490, %v1586
    %v1588 = vpop.f32.mrf.mxu0
    %v1589 = vpop.f32.mrf.mxu0
    %v1590 = vadd.f32 %v1493, %v1589
    %v1591 = vpop.f32.mrf.mxu0
    %1592 = vmatprep.mubr.bf16.mxu0 %v1398
    %1593 = vmatmul.mubr.bf16.gmra.mxu0 %v1397
    %v1594 = vpop.f32.mrf.mxu0
    %v1595 = vadd.f32 %v1498, %v1594
    %v1596 = vpop.f32.mrf.mxu0
    %v1597 = vpop.f32.mrf.mxu0
    %v1598 = vadd.f32 %v1501, %v1597
    %v1599 = vpop.f32.mrf.mxu0
    %1600 = vmatprep.mubr.bf16.mxu0 %v1402
    %1601 = vmatmul.mubr.bf16.gmra.mxu0 %v1401
    %v1602 = vpop.f32.mrf.mxu0
    %v1603 = vadd.f32 %v1506, %v1602
    %v1604 = vpop.f32.mrf.mxu0
    %v1605 = vpop.f32.mrf.mxu0
    %v1606 = vadd.f32 %v1509, %v1605
    %v1607 = vpop.f32.mrf.mxu0
    %1608 = vmatprep.mubr.bf16.mxu0 %v1406
    %1609 = vmatmul.mubr.bf16.gmra.mxu0 %v1405
    %v1610 = vpop.f32.mrf.mxu0
    %v1611 = vadd.f32 %v1514, %v1610
    %v1612 = vpop.f32.mrf.mxu0
    %v1613 = vpop.f32.mrf.mxu0
    %v1614 = vadd.f32 %v1517, %v1613
    %v1615 = vpop.f32.mrf.mxu0
    %1616 = vmatprep.mubr.bf16.mxu0 %v1410
    %1617 = vmatmul.mubr.bf16.gmra.mxu0 %v1409
    %v1618 = vpop.f32.mrf.mxu0
    %v1619 = vadd.f32 %v1522, %v1618
    %v1620 = vpop.f32.mrf.mxu0
    %v1621 = vpop.f32.mrf.mxu0
    %v1622 = vadd.f32 %v1525, %v1621
    %v1623 = vpop.f32.mrf.mxu0
    %1624 = vmatprep.mubr.bf16.mxu0 %v1414
    %1625 = vmatmul.mubr.bf16.gmra.mxu0 %v1413
    %v1626 = vpop.f32.mrf.mxu0
    %v1627 = vadd.f32 %v1530, %v1626
    %v1628 = vpop.f32.mrf.mxu0
    %v1629 = vpop.f32.mrf.mxu0
    %v1630 = vadd.f32 %v1533, %v1629
    %v1631 = vpop.f32.mrf.mxu0
    %1632 = vmatprep.mubr.bf16.mxu0 %v1418
    %1633 = vmatmul.mubr.bf16.gmra.mxu0 %v1417
    %v1634 = vpop.f32.mrf.mxu0
    %v1635 = vadd.f32 %v1538, %v1634
    %v1636 = vpop.f32.mrf.mxu0
    %v1637 = vpop.f32.mrf.mxu0
    %v1638 = vadd.f32 %v1541, %v1637
    %v1639 = vpop.f32.mrf.mxu0
    %1640 = vmatprep.mubr.bf16.mxu0 %v1422
    %1641 = vmatmul.mubr.bf16.gmra.mxu0 %v1421
    %v1642 = vpop.f32.mrf.mxu0
    %v1643 = vadd.f32 %v1546, %v1642
    %v1644 = vpop.f32.mrf.mxu0
    %v1645 = vpop.f32.mrf.mxu0
    %v1646 = vadd.f32 %v1549, %v1645
    %v1647 = vpop.f32.mrf.mxu0
    %1648 = vdwg.mxu0
    %v1649 = vmax.f32 %v1587, 0.0
    %v1650 = vmax.f32 %v1590, 0.0
    %v1651 = vmax.f32 %v1595, 0.0
    %v1652 = vmax.f32 %v1598, 0.0
    %v1653 = vmax.f32 %v1603, 0.0
    %v1654 = vmax.f32 %v1606, 0.0
    %v1655 = vmax.f32 %v1611, 0.0
    %v1656 = vmax.f32 %v1614, 0.0
    %v1657 = vmax.f32 %v1619, 0.0
    %v1658 = vmax.f32 %v1622, 0.0
    %v1659 = vmax.f32 %v1627, 0.0
    %v1660 = vmax.f32 %v1630, 0.0
    %v1661 = vmax.f32 %v1635, 0.0
    %v1662 = vmax.f32 %v1638, 0.0
    %v1663 = vmax.f32 %v1643, 0.0
    %v1664 = vmax.f32 %v1646, 0.0
    %v1665 = vld [vmem:[%s5] sm:$0xff]
    %v1666 = vld [vmem:[%s5 + $0x8] sm:$0xff]
    %v1667 = vld [vmem:[%s5 + $0x10] sm:$0xff]
    %v1668 = vld [vmem:[%s5 + $0x18] sm:$0xff]
    %v1669 = vld [vmem:[%s5 + $0x20] sm:$0xff]
    %v1670 = vld [vmem:[%s5 + $0x28] sm:$0xff]
    %v1671 = vld [vmem:[%s5 + $0x30] sm:$0xff]
    %v1672 = vld [vmem:[%s5 + $0x38] sm:$0xff]
    %v1673 = vld [vmem:[%s5 + $0x40] sm:$0xff]
    %v1674 = vld [vmem:[%s5 + $0x48] sm:$0xff]
    %v1675 = vld [vmem:[%s5 + $0x50] sm:$0xff]
    %v1676 = vld [vmem:[%s5 + $0x58] sm:$0xff]
    %v1677 = vld [vmem:[%s5 + $0x60] sm:$0xff]
    %v1678 = vld [vmem:[%s5 + $0x68] sm:$0xff]
    %v1679 = vld [vmem:[%s5 + $0x70] sm:$0xff]
    %v1680 = vld [vmem:[%s5 + $0x78] sm:$0xff]
    %1682 = vset.pattern.permute.xlu0 0
    %1683 = vperm.xlu0 %1682, %v1665
    %v1684 = vpop.permute.xlu0 %1683
    %1687 = vset.pattern.permute.xlu0 0
    %1688 = vperm.xlu0 %1687, %v1666
    %v1689 = vpop.permute.xlu0 %1688
    %1692 = vset.pattern.permute.xlu0 0
    %1693 = vperm.xlu0 %1692, %v1667
    %v1694 = vpop.permute.xlu0 %1693
    %1697 = vset.pattern.permute.xlu0 0
    %1698 = vperm.xlu0 %1697, %v1668
    %v1699 = vpop.permute.xlu0 %1698
    %1702 = vset.pattern.permute.xlu0 0
    %1703 = vperm.xlu0 %1702, %v1669
    %v1704 = vpop.permute.xlu0 %1703
    %1707 = vset.pattern.permute.xlu0 0
    %1708 = vperm.xlu0 %1707, %v1670
    %v1709 = vpop.permute.xlu0 %1708
    %1712 = vset.pattern.permute.xlu0 0
    %1713 = vperm.xlu0 %1712, %v1671
    %v1714 = vpop.permute.xlu0 %1713
    %1717 = vset.pattern.permute.xlu0 0
    %1718 = vperm.xlu0 %1717, %v1672
    %v1719 = vpop.permute.xlu0 %1718
    %1722 = vset.pattern.permute.xlu0 0
    %1723 = vperm.xlu0 %1722, %v1673
    %v1724 = vpop.permute.xlu0 %1723
    %1727 = vset.pattern.permute.xlu0 0
    %1728 = vperm.xlu0 %1727, %v1674
    %v1729 = vpop.permute.xlu0 %1728
    %1732 = vset.pattern.permute.xlu0 0
    %1733 = vperm.xlu0 %1732, %v1675
    %v1734 = vpop.permute.xlu0 %1733
    %1737 = vset.pattern.permute.xlu0 0
    %1738 = vperm.xlu0 %1737, %v1676
    %v1739 = vpop.permute.xlu0 %1738
    %1742 = vset.pattern.permute.xlu0 0
    %1743 = vperm.xlu0 %1742, %v1677
    %v1744 = vpop.permute.xlu0 %1743
    %1747 = vset.pattern.permute.xlu0 0
    %1748 = vperm.xlu0 %1747, %v1678
    %v1749 = vpop.permute.xlu0 %1748
    %1752 = vset.pattern.permute.xlu0 0
    %1753 = vperm.xlu0 %1752, %v1679
    %v1754 = vpop.permute.xlu0 %1753
    %1757 = vset.pattern.permute.xlu0 0
    %1758 = vperm.xlu0 %1757, %v1680
    %v1759 = vpop.permute.xlu0 %1758
    %v1761 = vmul.f32 %v1649, %v1684
    %v1762 = vmul.f32 %v1650, %v1689
    %v1763 = vmul.f32 %v1651, %v1694
    %v1764 = vmul.f32 %v1652, %v1699
    %v1765 = vmul.f32 %v1653, %v1704
    %v1766 = vmul.f32 %v1654, %v1709
    %v1767 = vmul.f32 %v1655, %v1714
    %v1768 = vmul.f32 %v1656, %v1719
    %v1769 = vmul.f32 %v1657, %v1724
    %v1770 = vmul.f32 %v1658, %v1729
    %v1771 = vmul.f32 %v1659, %v1734
    %v1772 = vmul.f32 %v1660, %v1739
    %v1773 = vmul.f32 %v1661, %v1744
    %v1774 = vmul.f32 %v1662, %v1749
    %v1775 = vmul.f32 %v1663, %v1754
    %v1776 = vmul.f32 %v1664, %v1759
    %v1777 = vadd.f32 %v1761, %v1762
    %v1778 = vadd.f32 %v1777, %v1763
    %v1779 = vadd.f32 %v1778, %v1764
    %v1780 = vadd.f32 %v1779, %v1765
    %v1781 = vadd.f32 %v1780, %v1766
    %v1782 = vadd.f32 %v1781, %v1767
    %v1783 = vadd.f32 %v1782, %v1768
    %v1784 = vadd.f32 %v1783, %v1769
    %v1785 = vadd.f32 %v1784, %v1770
    %v1786 = vadd.f32 %v1785, %v1771
    %v1787 = vadd.f32 %v1786, %v1772
    %v1788 = vadd.f32 %v1787, %v1773
    %v1789 = vadd.f32 %v1788, %v1774
    %v1790 = vadd.f32 %v1789, %v1775
    %v1791 = vadd.f32 %v1790, %v1776
    %v1792 = vrot.slane %v1791, 4
    %v1793 = vadd.f32 %v1791, %v1792
    %v1794 = vrot.slane %v1793, 2
    %v1795 = vadd.f32 %v1793, %v1794
    %v1796 = vrot.slane %v1795, 1
    %v1797 = vadd.f32 %v1795, %v1796
    %s1798 = sld [smem:[#allocation2]]
    %v1799 = vstv %s1798
    %v1800 = vadd.f32 %v1797, %v1799
    %v1801 = vxor.u32 %v1800, 2147483648
    %v1802 = vmul.f32 %v1801, 1.442695
    %v1803 = vpow.pop %v1802
    %v1804 = vadd.f32 %v1803, 1.0
    %v1805 = vrcp.pop %v1804
    %v1806 = vmul.f32 1.0, %v1805
    %1807 = vst [vmem:[#allocation3] sm:$0x1] %v1806
    // Predicated region
    $region30: #{tpu_custom_call.1} parent=1 // pred_check
      _
    $region31: #{tpu_custom_call.1} parent=1 // pred_check_branch
      %1809 = sbr.rel (0) target = $region33
    $region32: #{tpu_custom_call.1} parent=1 // pred_region
      %s1811 = ssub.s32 16, 16
      %1812 = vsyncadd [#allocation4], %s1811
      %s1814 = sshll.u32 [#allocation3], 4
      %s1815 = int_to_ptr.vmem [resolvable:$true] %s1814
      %1817 = dma.vmem_to_hbm [thread:$0]  %s1815, 16, %s7, [#allocation4]
    $region33: #{tpu_custom_call.1} parent=1 // pred_fallthru
      _
    // Predicated region
    $region34: #{tpu_custom_call.1} parent=1 // pred_check
      _
    $region35: #{tpu_custom_call.1} parent=1 // pred_check_branch
      %1819 = sbr.rel (0) target = $region37
    $region36: #{tpu_custom_call.1} parent=1 // pred_region
      %1820 = dma.done [#allocation4], 16
    $region37: #{tpu_custom_call.1} parent=1 // pred_fallthru
      _
    %1821 = vsyncpa [#allocation4], 1

</llo_original>
